<compile_context>
chip_gen: v6e
topology: v6e:2x2x1
jax: 0.10.0
libtpu: 0.0.40
codegen_flags: <defaults>
</compile_context>

<pallas_src>
import math
import functools

import numpy as np
import jax
import jax.numpy as jnp
from jax.experimental import pallas as pl
from jax.experimental.pallas import tpu as pltpu

EPS = 1e-5
T_MAX = 10.0


# ----------------------------------------------------------------------------
# Pallas kernel: embed -> clamp -> searchsorted (monotone select chain) ->
# OU marginal mean/var -> output projections -> sample (mean + sqrt(var)*noise)
# ----------------------------------------------------------------------------
def _sde_kernel(x_ref, noise_ref, wemb_ref, bemb_ref, bnd_ref, al_ref, ar_ref,
                mu_ref, dmu_ref, varl_ref, varr_ref, cov_ref, vsi_ref,
                theta_ref, w_ref, w2_ref, b_ref, out_ref, *, t_min, t_max,
                n_bnd):
    # t = clamp(embed_func(X)).  HIGHEST on this tiny matmul keeps the interval
    # selection bit-stable vs. the reference; the big projections below use the
    # fast default MXU path (MXU slot has huge slack either way).
    t = jnp.dot(x_ref[...], wemb_ref[...], preferred_element_type=jnp.float32,
                precision=jax.lax.Precision.HIGHEST) + bemb_ref[...]
    t = jnp.clip(t, t_min, t_max)                       # (TN, 128)

    bnd = bnd_ref[...]                                  # (M, 128) interior bnds
    tabs = (al_ref[...], ar_ref[...], mu_ref[...], dmu_ref[...],
            varl_ref[...], varr_ref[...], cov_ref[...], vsi_ref[...])

    # Monotone conditional-overwrite gather.  st is sorted per lane host-side
    # (argsort in precompute_tables), so cmp_j = (bnd[j] < t) is monotone in j
    # even with tied inducing times, and the selected row index equals
    # #{interior boundaries strictly < t} — exactly the reference's
    # clip(searchsorted(...), 1, M+1) - 1 thanks to the +/-EPS endpoint pad and
    # the clamp on t.  One vselect per table per boundary; no add/and/not.
    accs = [tab[0:1, :] for tab in tabs]
    for j in range(n_bnd):
        sel = bnd[j:j + 1, :] < t
        accs = [jnp.where(sel, tab[j + 1:j + 2, :], acc)
                for tab, acc in zip(tabs, accs)]
    a_l, a_r, mu_l, dmu2, var_l2, var_r2, cov2, vsivdt = accs
    # a_l = theta*st_l, a_r = theta*st_r, dmu2 = ivdt*dmu,
    # var_l2 = ivdt^2*var_l, var_r2 = ivdt^2*var_r, cov2 = 2*ivdt^2*cov,
    # vsivdt = var_scale*ivdt   (all folded host-side).

    theta = theta_ref[...]                              # (1, 128)
    u = theta * t
    exp_l = jnp.exp(a_l - u)      # exp(-theta*(t - st_l))      (EUP)
    exp_r = jnp.exp(u - a_r)      # exp(-theta*(st_r - t))      (EUP)
    vdl = 1.0 - exp_l * exp_l     # var_dt_l
    vdr = 1.0 - exp_r * exp_r     # var_dt_r

    gl = vdr * exp_l              # = gamma_l / ivdt
    gr = vdl * exp_r              # = gamma_r / ivdt

    mean = gr * dmu2 + mu_l * exp_l
    var = (gl * gl * var_l2 + gr * gr * var_r2 + gl * gr * cov2
           + vsivdt * vdr * vdl)

    # Lane-dense 128x128 block-diag output projections (w2 = w*w precomputed).
    mean_out = jnp.dot(mean, w_ref[...],
                       preferred_element_type=jnp.float32) + b_ref[...]
    var_out = jnp.dot(var, w2_ref[...], preferred_element_type=jnp.float32)
    # Keep the EPS clamp: it matches torch.clamp(var, min=EPS) and keeps the
    # sqrt finite on padded / out-of-bounds tail rows.
    var_out = jnp.maximum(var_out, EPS)

    # sample_marginal: mean + sqrt(var) * N(0,1).  Noise supplied externally so
    # the result is deterministic / checkable against the reference.
    # TODO(synk): optionally bf16 noise in HBM (cast here) or in-kernel
    # pltpu.prng_* noise to shrink the HBM noise stream (changes RNG semantics).
    out_ref[...] = mean_out + jnp.sqrt(var_out) * noise_ref[...]


# ----------------------------------------------------------------------------
# Parameter init + parameter-only preprocessing (glue, plain JAX)
# ----------------------------------------------------------------------------
def init_params(key, dim_input, dim_embed, num_heads, n_inducing):
    H = num_heads
    V = dim_embed // num_heads
    E = H * V
    Din = dim_input
    M = n_inducing
    ks = jax.random.split(key, 11)
    lin = 1.0 / math.sqrt(Din)
    ew = 1.0 / math.sqrt(E)
    p = {
        'embed_W': jax.random.uniform(ks[0], (H, Din), minval=-lin, maxval=lin),
        'embed_b': jax.random.uniform(ks[1], (H,), minval=-lin, maxval=lin),
        'log_sigma': jax.random.normal(ks[2], (H, V)) * 0.1,
        'param_theta': jax.random.normal(ks[3], (H, V)) * 0.1 - 1.0,
        'weight': jax.random.uniform(ks[4], (E, E), minval=-ew, maxval=ew),
        'bias': jax.random.uniform(ks[5], (E,), minval=-ew, maxval=ew),
        'Z': jax.random.normal(ks[6], (M, Din)),
        'mu_W': jax.random.uniform(ks[7], (E, Din), minval=-lin, maxval=lin),
        'mu_b': jax.random.uniform(ks[8], (E,), minval=-lin, maxval=lin),
        'lbd_q': jax.random.normal(ks[9], (M, H, V)) * 0.1,
        'tau_q': jax.random.normal(ks[10], (M, H, V)) * 0.1,
    }
    return {k: v.astype(jnp.float32) for k, v in p.items()}


def precompute_tables(p, t_min, t_max, r_min=0.01, r_max=0.2):
    """Parameter-only preprocessing: sort_inducing_points + interval tables.

    All tables are lane layout (., E) with e = h * vdim + v.  These are the
    *unfolded* tables used by the pure-JAX reference; pack_tables() derives the
    folded, lane-packed tables consumed by the Pallas kernel.
    """
    H, V = p['log_sigma'].shape
    E = H * V
    M = p['Z'].shape[0]
    max_theta, min_theta = -math.log(r_min), -math.log(r_max)

    theta_p = min_theta + jax.nn.sigmoid(p['param_theta']) * (max_theta - min_theta)
    var_scale = 0.5 * jnp.exp(2.0 * p['log_sigma']) / theta_p

    t_q = jnp.clip(p['Z'] @ p['embed_W'].T + p['embed_b'], t_min, t_max)   # (M, H)
    order = jnp.argsort(t_q, axis=0)
    t_s = jnp.take_along_axis(t_q, order, axis=0)

    mu_q = (p['Z'] @ p['mu_W'].T + p['mu_b']).reshape(M, H, V)
    idx3 = jnp.broadcast_to(order[:, :, None], (M, H, V))
    mu_s = jnp.take_along_axis(mu_q, idx3, axis=0)
    lbd_s = jnp.take_along_axis(p['lbd_q'], idx3, axis=0)
    tau_s = jnp.take_along_axis(p['tau_q'], idx3, axis=0)

    var_q = lbd_s ** 2 + tau_s ** 2
    cov_q = jnp.concatenate([lbd_s[:-1] * tau_s[1:],
                             jnp.zeros((1, H, V), jnp.float32)], axis=0)

    # add endpoints
    t_e = jnp.concatenate([jnp.full((1, H), t_min - EPS, jnp.float32),
                           t_s,
                           jnp.full((1, H), t_max + EPS, jnp.float32)], axis=0)
    zpad = jnp.zeros((1, H, V), jnp.float32)
    mu_e = jnp.concatenate([zpad, mu_s, zpad], axis=0)
    var_e = jnp.concatenate([zpad, var_q, zpad], axis=0)
    cov_e = jnp.concatenate([zpad, cov_q, zpad], axis=0)

    theta_dt = -theta_p[None] * (t_e[1:] - t_e[:-1])[:, :, None]   # (M+1, H, V)
    var_dt_tab = 1.0 - jnp.exp(2.0 * theta_dt)
    # Clamp before inverting: robust to tied inducing times (zero-length intervals).
    inv_vdt_tab = 1.0 / jnp.maximum(var_dt_tab, EPS)
    diff_mu_tab = mu_e[1:] - jnp.exp(theta_dt) * mu_e[:-1]

    return dict(
        wemb=jnp.repeat(p['embed_W'].T, V, axis=1),            # (Din, E)
        bemb=jnp.repeat(p['embed_b'], V)[None, :],              # (1, E)
        st=jnp.repeat(t_e, V, axis=1),                          # (M+2, E)
        mu=mu_e.reshape(M + 2, E),
        var=var_e.reshape(M + 2, E),
        cov=cov_e.reshape(M + 2, E),
        dmu=diff_mu_tab.reshape(M + 1, E),
        ivdt=inv_vdt_tab.reshape(M + 1, E),
        theta=theta_p.reshape(1, E),
        vscale=var_scale.reshape(1, E),
        w=p['weight'],
        w2=p['weight'] ** 2,
        b=p['bias'][None, :],
    )


_TABLE_ORDER = ('wemb', 'bemb', 'bnd', 'a_l', 'a_r', 'mu', 'dmu',
                'var_l', 'var_r', 'cov', 'vsi', 'theta', 'w', 'w2', 'b')


def pack_tables(tables, pack=None):
    """Fold constants and lane-pack the kernel tables (call ONCE per param set).

    Folding: every gathered quantity is pre-multiplied by ivdt powers so the
    kernel does no divides and fewer multiplies; all gathered tables are
    indexed by the *left* interval index (length M+1).
    Packing: per-head tables are tiled P times along lanes, projection matrices
    become block-diagonal (kron) so P logical rows share one 128-lane vreg.
    """
    E = tables['w'].shape[0]
    if pack is None:
        pack = 128 // E if (E <= 128 and 128 % E == 0) else 1

    st = tables['st']             # (M+2, E)
    theta = tables['theta']       # (1, E)
    ivdt = tables['ivdt']         # (M+1, E)
    m1 = ivdt.shape[0]            # = M+1 left-interval entries

    a_l = theta * st[:m1]                       # theta * st_l
    a_r = theta * st[1:m1 + 1]                  # theta * st_r
    mu_l = tables['mu'][:m1]
    dmu2 = ivdt * tables['dmu']
    var_l2 = (ivdt ** 2) * tables['var'][:m1]
    var_r2 = (ivdt ** 2) * tables['var'][1:m1 + 1]
    cov2 = 2.0 * (ivdt ** 2) * tables['cov'][:m1]
    vsivdt = tables['vscale'] * ivdt
    bnd = st[1:m1]                              # (M, E) interior boundaries

    eye_p = jnp.eye(pack, dtype=jnp.float32)
    lt = lambda a: jnp.tile(a, (1, pack))

    packed = dict(
        wemb=jnp.kron(eye_p, tables['wemb']),   # (P*Din, P*E) block-diag
        bemb=lt(tables['bemb']),
        bnd=lt(bnd),
        a_l=lt(a_l), a_r=lt(a_r), mu=lt(mu_l), dmu=lt(dmu2),
        var_l=lt(var_l2), var_r=lt(var_r2), cov=lt(cov2), vsi=lt(vsivdt),
        theta=lt(tables['theta']),
        w=jnp.kron(eye_p, tables['w']),         # (P*E, P*E) block-diag
        w2=jnp.kron(eye_p, tables['w2']),
        b=lt(tables['b']),
    )
    packed['pack'] = int(pack)
    packed['dim_embed'] = int(E)
    packed['dim_input'] = int(tables['wemb'].shape[0])
    packed['n_bnd'] = int(bnd.shape[0])
    return packed


# ----------------------------------------------------------------------------
# Wrapper: lane packing, minimal padding, pallas_call with large row tiles
# ----------------------------------------------------------------------------
def multihead_sde_forward(X, noise, packed, *, t_min, t_max, tile_rows=4096):
    lead = X.shape[:-1]
    Din = packed['dim_input']
    E = packed['dim_embed']
    P = packed['pack']
    lanes = P * E
    assert X.shape[-1] == Din

    Xf = X.reshape(-1, Din).astype(jnp.float32)
    Nf = noise.reshape(-1, E).astype(jnp.float32)
    N = Xf.shape[0]

    # Pad only to a multiple of P (usually a no-op); the ragged grid tail is
    # handled by Pallas partial-block semantics (OOB writes dropped), so no
    # full-array pad copies are needed.
    pad_rows = (-N) % P
    if pad_rows:
        Xf = jnp.pad(Xf, ((0, pad_rows), (0, 0)))
        Nf = jnp.pad(Nf, ((0, pad_rows), (0, 0)))
    n_super = (N + pad_rows) // P
    Xs = Xf.reshape(n_super, P * Din)
    Ns = Nf.reshape(n_super, lanes)

    # Row-tile selection: big tiles amortize the ~0.35us per-step overhead, but
    # keep >=2 grid steps (v7x two-TC sharding of the "parallel" axis) and
    # (8,128)-aligned blocks that never exceed the array extent.
    desired_sr = max(tile_rows // P, 8)
    if n_super < 16:
        tile_sr = n_super                        # single full-extent block
    else:
        tile_sr = min(desired_sr, n_super // 2)
        tile_sr = max(8, (tile_sr // 8) * 8)
    grid_steps = pl.cdiv(n_super, tile_sr)

    tab_args = [packed[k] for k in _TABLE_ORDER]
    kernel = functools.partial(_sde_kernel, t_min=t_min, t_max=t_max,
                               n_bnd=packed['n_bnd'])

    def full_spec(a):
        nd = a.ndim
        return pl.BlockSpec(a.shape, lambda i, _nd=nd: (0,) * _nd)

    out = pl.pallas_call(
        kernel,
        out_shape=jax.ShapeDtypeStruct((n_super, lanes), jnp.float32),
        grid=(grid_steps,),
        in_specs=[pl.BlockSpec((tile_sr, P * Din), lambda i: (i, 0)),
                  pl.BlockSpec((tile_sr, lanes), lambda i: (i, 0))]
                 + [full_spec(a) for a in tab_args],
        out_specs=pl.BlockSpec((tile_sr, lanes), lambda i: (i, 0)),
        compiler_params=pltpu.CompilerParams(
            dimension_semantics=("parallel",),    # row grid shards across TCs
            vmem_limit_bytes=32 * 1024 * 1024),   # covers v5e's 16 MiB default
    )(Xs, Ns, *tab_args)

    out = out.reshape(n_super * P, E)
    if pad_rows:
        out = out[:N]
    return out.reshape(lead + (E,))


# ----------------------------------------------------------------------------
# Pure-JAX reference (take_along_axis gathers, unpacked matmuls) for validation
# ----------------------------------------------------------------------------
def reference_forward(X, noise, tables, *, t_min, t_max):
    hi = jax.lax.Precision.HIGHEST
    Xf = X.reshape(-1, X.shape[-1]).astype(jnp.float32)
    N = Xf.shape[0]
    E = tables['w'].shape[0]
    m2 = tables['st'].shape[0]
    m1 = m2 - 1

    t = jnp.clip(jnp.dot(Xf, tables['wemb'], precision=hi) + tables['bemb'],
                 t_min, t_max)
    st = tables['st']
    cnt = jnp.sum((st[None, :, :] < t[:, None, :]).astype(jnp.int32), axis=1)
    ind_r = jnp.clip(cnt, 1, m1)
    ind_l = ind_r - 1

    g = lambda tab, idx: jnp.take_along_axis(tab, idx, axis=0)
    st_l, st_r = g(st, ind_l), g(st, ind_r)
    mu_l = g(tables['mu'], ind_l)
    var_l = g(tables['var'], ind_l)
    var_r = g(tables['var'], ind_r)
    cov_lr = g(tables['cov'], ind_l)
    dmu = g(tables['dmu'], ind_l)
    ivdt = g(tables['ivdt'], ind_l)

    theta = tables['theta']
    vscale = tables['vscale']
    exp_l = jnp.exp(-theta * (t - st_l))
    exp_r = jnp.exp(-theta * (st_r - t))
    var_dt_l = 1.0 - exp_l * exp_l
    var_dt_r = 1.0 - exp_r * exp_r
    scale_r = var_dt_l * ivdt
    gamma_r = scale_r * exp_r
    gamma_l = var_dt_r * exp_l * ivdt
    mean = gamma_r * dmu + mu_l * exp_l
    var = (gamma_l ** 2 * var_l + gamma_r ** 2 * var_r
           + 2.0 * gamma_l * gamma_r * cov_lr + vscale * var_dt_r * scale_r)

    # Same matmul precision policy as the kernel (default MXU on projections).
    mean_out = jnp.dot(mean, tables['w']) + tables['b']
    var_out = jnp.maximum(jnp.dot(var, tables['w2']), EPS)
    out = mean_out + jnp.sqrt(var_out) * noise.reshape(N, E)
    return out.reshape(X.shape[:-1] + (E,))


if __name__ == "__main__":
    # Small shapes consistent with the module's forward.
    dim_input, dim_embed, num_heads, n_inducing = 16, 32, 4, 8
    batch, seq = 2, 8
    t_max = T_MAX / n_inducing ** 2
    t_min = -T_MAX / n_inducing ** 2
    E = dim_embed

    root = jax.random.PRNGKey(0)
    kp, kx, kn = jax.random.split(root, 3)

    params = init_params(kp, dim_input, dim_embed, num_heads, n_inducing)
    tables = precompute_tables(params, t_min, t_max)
    # Folding + lane packing hoisted out of the per-call path (once per params).
    packed = pack_tables(tables)

    X = jax.random.normal(kx, (batch, seq, dim_input), dtype=jnp.float32)
    # Deterministic stand-in for torch.randn_like in sample_marginal.
    noise = jax.random.normal(kn, (batch, seq, E), dtype=jnp.float32)

    out = multihead_sde_forward(X, noise, packed, t_min=t_min, t_max=t_max)
    out = jax.block_until_ready(out)

    ref = reference_forward(X, noise, tables, t_min=t_min, t_max=t_max)
    assert out.shape == (batch, seq, E)
    assert bool(jnp.all(jnp.isfinite(out)))
    np.testing.assert_allclose(np.asarray(out), np.asarray(ref),
                               rtol=5e-3, atol=5e-3)
    # TODO(synk): inference_mode='joint' (sample_smoothing_cumsum) raises
    # NotImplementedError in the PyTorch source, so it is not implemented here.
    print("KERNEL_OK")
</pallas_src>

<mosaic_0001>
module attributes {stable_mosaic.version = 11 : i64} {
  func.func @_sde_kernel(%arg0: i32, %arg1: memref<4x64xf32, #tpu.memory_space<vmem>>, %arg2: memref<4x128xf32, #tpu.memory_space<vmem>>, %arg3: memref<64x128xf32, #tpu.memory_space<vmem>>, %arg4: memref<1x128xf32, #tpu.memory_space<vmem>>, %arg5: memref<8x128xf32, #tpu.memory_space<vmem>>, %arg6: memref<9x128xf32, #tpu.memory_space<vmem>>, %arg7: memref<9x128xf32, #tpu.memory_space<vmem>>, %arg8: memref<9x128xf32, #tpu.memory_space<vmem>>, %arg9: memref<9x128xf32, #tpu.memory_space<vmem>>, %arg10: memref<9x128xf32, #tpu.memory_space<vmem>>, %arg11: memref<9x128xf32, #tpu.memory_space<vmem>>, %arg12: memref<9x128xf32, #tpu.memory_space<vmem>>, %arg13: memref<9x128xf32, #tpu.memory_space<vmem>>, %arg14: memref<1x128xf32, #tpu.memory_space<vmem>>, %arg15: memref<128x128xf32, #tpu.memory_space<vmem>>, %arg16: memref<128x128xf32, #tpu.memory_space<vmem>>, %arg17: memref<1x128xf32, #tpu.memory_space<vmem>>, %arg18: memref<4x128xf32, #tpu.memory_space<vmem>>) attributes {dimension_semantics = [#tpu.dimension_semantics<parallel>], iteration_bounds = array<i64: 1>, scalar_prefetch = 0 : i64, scratch_operands = 0 : i64, tpu.core_type = #tpu.core_type<tc>, window_params = [{transform_indices = @transform_0, window_bounds = array<i64: 4, 64>}, {transform_indices = @transform_1, window_bounds = array<i64: 4, 128>}, {pipeline_mode = #tpu.pipeline_mode<synchronous>, transform_indices = @transform_2, window_bounds = array<i64: 64, 128>}, {pipeline_mode = #tpu.pipeline_mode<synchronous>, transform_indices = @transform_3, window_bounds = array<i64: 1, 128>}, {pipeline_mode = #tpu.pipeline_mode<synchronous>, transform_indices = @transform_4, window_bounds = array<i64: 8, 128>}, {pipeline_mode = #tpu.pipeline_mode<synchronous>, transform_indices = @transform_5, window_bounds = array<i64: 9, 128>}, {pipeline_mode = #tpu.pipeline_mode<synchronous>, transform_indices = @transform_6, window_bounds = array<i64: 9, 128>}, {pipeline_mode = #tpu.pipeline_mode<synchronous>, transform_indices = @transform_7, window_bounds = array<i64: 9, 128>}, {pipeline_mode = #tpu.pipeline_mode<synchronous>, transform_indices = @transform_8, window_bounds = array<i64: 9, 128>}, {pipeline_mode = #tpu.pipeline_mode<synchronous>, transform_indices = @transform_9, window_bounds = array<i64: 9, 128>}, {pipeline_mode = #tpu.pipeline_mode<synchronous>, transform_indices = @transform_10, window_bounds = array<i64: 9, 128>}, {pipeline_mode = #tpu.pipeline_mode<synchronous>, transform_indices = @transform_11, window_bounds = array<i64: 9, 128>}, {pipeline_mode = #tpu.pipeline_mode<synchronous>, transform_indices = @transform_12, window_bounds = array<i64: 9, 128>}, {pipeline_mode = #tpu.pipeline_mode<synchronous>, transform_indices = @transform_13, window_bounds = array<i64: 1, 128>}, {pipeline_mode = #tpu.pipeline_mode<synchronous>, transform_indices = @transform_14, window_bounds = array<i64: 128, 128>}, {pipeline_mode = #tpu.pipeline_mode<synchronous>, transform_indices = @transform_15, window_bounds = array<i64: 128, 128>}, {pipeline_mode = #tpu.pipeline_mode<synchronous>, transform_indices = @transform_16, window_bounds = array<i64: 1, 128>}, {transform_indices = @transform_17, window_bounds = array<i64: 4, 128>}]} {
    %c0 = arith.constant 0 : index
    %c0_0 = arith.constant 0 : index
    %0 = vector.load %arg1[%c0, %c0_0] : memref<4x64xf32, #tpu.memory_space<vmem>>, vector<4x64xf32>
    %c0_1 = arith.constant 0 : index
    %c0_2 = arith.constant 0 : index
    %1 = vector.load %arg3[%c0_1, %c0_2] : memref<64x128xf32, #tpu.memory_space<vmem>>, vector<64x128xf32>
    %cst = arith.constant dense<0.000000e+00> : vector<4x128xf32>
    %2 = tpu.matmul %0, %1, %cst {dimension_numbers = #tpu.dot_dimension_numbers<[1], [0], [0], [1], [0, 0, 1, 1], [], []>, precision = #tpu.contract_precision<fp32>} : vector<4x64xf32>, vector<64x128xf32>, vector<4x128xf32> -> vector<4x128xf32>
    %c0_3 = arith.constant 0 : index
    %c0_4 = arith.constant 0 : index
    %3 = vector.load %arg4[%c0_3, %c0_4] : memref<1x128xf32, #tpu.memory_space<vmem>>, vector<1x128xf32>
    %4 = vector.broadcast %3 : vector<1x128xf32> to vector<4x128xf32>
    %5 = arith.addf %2, %4 : vector<4x128xf32>
    %cst_5 = arith.constant -1.562500e-01 : f32
    %cst_6 = arith.constant 1.562500e-01 : f32
    %6 = vector.broadcast %cst_5 : f32 to vector<4x128xf32>
    %7 = arith.maximumf %6, %5 : vector<4x128xf32>
    %8 = vector.broadcast %cst_6 : f32 to vector<4x128xf32>
    %9 = arith.minimumf %8, %7 : vector<4x128xf32>
    %c0_7 = arith.constant 0 : index
    %c0_8 = arith.constant 0 : index
    %10 = vector.load %arg5[%c0_7, %c0_8] : memref<8x128xf32, #tpu.memory_space<vmem>>, vector<8x128xf32>
    %c0_9 = arith.constant 0 : index
    %c0_10 = arith.constant 0 : index
    %11 = vector.load %arg6[%c0_9, %c0_10] : memref<9x128xf32, #tpu.memory_space<vmem>>, vector<9x128xf32>
    %c0_11 = arith.constant 0 : index
    %c0_12 = arith.constant 0 : index
    %12 = vector.load %arg7[%c0_11, %c0_12] : memref<9x128xf32, #tpu.memory_space<vmem>>, vector<9x128xf32>
    %c0_13 = arith.constant 0 : index
    %c0_14 = arith.constant 0 : index
    %13 = vector.load %arg8[%c0_13, %c0_14] : memref<9x128xf32, #tpu.memory_space<vmem>>, vector<9x128xf32>
    %c0_15 = arith.constant 0 : index
    %c0_16 = arith.constant 0 : index
    %14 = vector.load %arg9[%c0_15, %c0_16] : memref<9x128xf32, #tpu.memory_space<vmem>>, vector<9x128xf32>
    %c0_17 = arith.constant 0 : index
    %c0_18 = arith.constant 0 : index
    %15 = vector.load %arg10[%c0_17, %c0_18] : memref<9x128xf32, #tpu.memory_space<vmem>>, vector<9x128xf32>
    %c0_19 = arith.constant 0 : index
    %c0_20 = arith.constant 0 : index
    %16 = vector.load %arg11[%c0_19, %c0_20] : memref<9x128xf32, #tpu.memory_space<vmem>>, vector<9x128xf32>
    %c0_21 = arith.constant 0 : index
    %c0_22 = arith.constant 0 : index
    %17 = vector.load %arg12[%c0_21, %c0_22] : memref<9x128xf32, #tpu.memory_space<vmem>>, vector<9x128xf32>
    %c0_23 = arith.constant 0 : index
    %c0_24 = arith.constant 0 : index
    %18 = vector.load %arg13[%c0_23, %c0_24] : memref<9x128xf32, #tpu.memory_space<vmem>>, vector<9x128xf32>
    %19 = vector.extract_strided_slice %11 {offsets = [0, 0], sizes = [1, 128], strides = [1, 1]} : vector<9x128xf32> to vector<1x128xf32>
    %20 = vector.extract_strided_slice %12 {offsets = [0, 0], sizes = [1, 128], strides = [1, 1]} : vector<9x128xf32> to vector<1x128xf32>
    %21 = vector.extract_strided_slice %13 {offsets = [0, 0], sizes = [1, 128], strides = [1, 1]} : vector<9x128xf32> to vector<1x128xf32>
    %22 = vector.extract_strided_slice %14 {offsets = [0, 0], sizes = [1, 128], strides = [1, 1]} : vector<9x128xf32> to vector<1x128xf32>
    %23 = vector.extract_strided_slice %15 {offsets = [0, 0], sizes = [1, 128], strides = [1, 1]} : vector<9x128xf32> to vector<1x128xf32>
    %24 = vector.extract_strided_slice %16 {offsets = [0, 0], sizes = [1, 128], strides = [1, 1]} : vector<9x128xf32> to vector<1x128xf32>
    %25 = vector.extract_strided_slice %17 {offsets = [0, 0], sizes = [1, 128], strides = [1, 1]} : vector<9x128xf32> to vector<1x128xf32>
    %26 = vector.extract_strided_slice %18 {offsets = [0, 0], sizes = [1, 128], strides = [1, 1]} : vector<9x128xf32> to vector<1x128xf32>
    %27 = vector.extract_strided_slice %10 {offsets = [0, 0], sizes = [1, 128], strides = [1, 1]} : vector<8x128xf32> to vector<1x128xf32>
    %28 = vector.broadcast %27 : vector<1x128xf32> to vector<4x128xf32>
    %29 = arith.cmpf olt, %28, %9 : vector<4x128xf32>
    %30 = vector.extract_strided_slice %11 {offsets = [1, 0], sizes = [1, 128], strides = [1, 1]} : vector<9x128xf32> to vector<1x128xf32>
    %31 = vector.shape_cast %30 : vector<1x128xf32> to vector<1x128xf32>
    %32 = vector.broadcast %31 : vector<1x128xf32> to vector<4x128xf32>
    %33 = vector.shape_cast %19 : vector<1x128xf32> to vector<1x128xf32>
    %34 = vector.broadcast %33 : vector<1x128xf32> to vector<4x128xf32>
    %35 = arith.select %29, %32, %34 : vector<4x128xi1>, vector<4x128xf32>
    %36 = vector.extract_strided_slice %12 {offsets = [1, 0], sizes = [1, 128], strides = [1, 1]} : vector<9x128xf32> to vector<1x128xf32>
    %37 = vector.shape_cast %36 : vector<1x128xf32> to vector<1x128xf32>
    %38 = vector.broadcast %37 : vector<1x128xf32> to vector<4x128xf32>
    %39 = vector.shape_cast %20 : vector<1x128xf32> to vector<1x128xf32>
    %40 = vector.broadcast %39 : vector<1x128xf32> to vector<4x128xf32>
    %41 = arith.select %29, %38, %40 : vector<4x128xi1>, vector<4x128xf32>
    %42 = vector.extract_strided_slice %13 {offsets = [1, 0], sizes = [1, 128], strides = [1, 1]} : vector<9x128xf32> to vector<1x128xf32>
    %43 = vector.shape_cast %42 : vector<1x128xf32> to vector<1x128xf32>
    %44 = vector.broadcast %43 : vector<1x128xf32> to vector<4x128xf32>
    %45 = vector.shape_cast %21 : vector<1x128xf32> to vector<1x128xf32>
    %46 = vector.broadcast %45 : vector<1x128xf32> to vector<4x128xf32>
    %47 = arith.select %29, %44, %46 : vector<4x128xi1>, vector<4x128xf32>
    %48 = vector.extract_strided_slice %14 {offsets = [1, 0], sizes = [1, 128], strides = [1, 1]} : vector<9x128xf32> to vector<1x128xf32>
    %49 = vector.shape_cast %48 : vector<1x128xf32> to vector<1x128xf32>
    %50 = vector.broadcast %49 : vector<1x128xf32> to vector<4x128xf32>
    %51 = vector.shape_cast %22 : vector<1x128xf32> to vector<1x128xf32>
    %52 = vector.broadcast %51 : vector<1x128xf32> to vector<4x128xf32>
    %53 = arith.select %29, %50, %52 : vector<4x128xi1>, vector<4x128xf32>
    %54 = vector.extract_strided_slice %15 {offsets = [1, 0], sizes = [1, 128], strides = [1, 1]} : vector<9x128xf32> to vector<1x128xf32>
    %55 = vector.shape_cast %54 : vector<1x128xf32> to vector<1x128xf32>
    %56 = vector.broadcast %55 : vector<1x128xf32> to vector<4x128xf32>
    %57 = vector.shape_cast %23 : vector<1x128xf32> to vector<1x128xf32>
    %58 = vector.broadcast %57 : vector<1x128xf32> to vector<4x128xf32>
    %59 = arith.select %29, %56, %58 : vector<4x128xi1>, vector<4x128xf32>
    %60 = vector.extract_strided_slice %16 {offsets = [1, 0], sizes = [1, 128], strides = [1, 1]} : vector<9x128xf32> to vector<1x128xf32>
    %61 = vector.shape_cast %60 : vector<1x128xf32> to vector<1x128xf32>
    %62 = vector.broadcast %61 : vector<1x128xf32> to vector<4x128xf32>
    %63 = vector.shape_cast %24 : vector<1x128xf32> to vector<1x128xf32>
    %64 = vector.broadcast %63 : vector<1x128xf32> to vector<4x128xf32>
    %65 = arith.select %29, %62, %64 : vector<4x128xi1>, vector<4x128xf32>
    %66 = vector.extract_strided_slice %17 {offsets = [1, 0], sizes = [1, 128], strides = [1, 1]} : vector<9x128xf32> to vector<1x128xf32>
    %67 = vector.shape_cast %66 : vector<1x128xf32> to vector<1x128xf32>
    %68 = vector.broadcast %67 : vector<1x128xf32> to vector<4x128xf32>
    %69 = vector.shape_cast %25 : vector<1x128xf32> to vector<1x128xf32>
    %70 = vector.broadcast %69 : vector<1x128xf32> to vector<4x128xf32>
    %71 = arith.select %29, %68, %70 : vector<4x128xi1>, vector<4x128xf32>
    %72 = vector.extract_strided_slice %18 {offsets = [1, 0], sizes = [1, 128], strides = [1, 1]} : vector<9x128xf32> to vector<1x128xf32>
    %73 = vector.shape_cast %72 : vector<1x128xf32> to vector<1x128xf32>
    %74 = vector.broadcast %73 : vector<1x128xf32> to vector<4x128xf32>
    %75 = vector.shape_cast %26 : vector<1x128xf32> to vector<1x128xf32>
    %76 = vector.broadcast %75 : vector<1x128xf32> to vector<4x128xf32>
    %77 = arith.select %29, %74, %76 : vector<4x128xi1>, vector<4x128xf32>
    %78 = vector.extract_strided_slice %10 {offsets = [1, 0], sizes = [1, 128], strides = [1, 1]} : vector<8x128xf32> to vector<1x128xf32>
    %79 = vector.broadcast %78 : vector<1x128xf32> to vector<4x128xf32>
    %80 = arith.cmpf olt, %79, %9 : vector<4x128xf32>
    %81 = vector.extract_strided_slice %11 {offsets = [2, 0], sizes = [1, 128], strides = [1, 1]} : vector<9x128xf32> to vector<1x128xf32>
    %82 = vector.shape_cast %81 : vector<1x128xf32> to vector<1x128xf32>
    %83 = vector.broadcast %82 : vector<1x128xf32> to vector<4x128xf32>
    %84 = arith.select %80, %83, %35 : vector<4x128xi1>, vector<4x128xf32>
    %85 = vector.extract_strided_slice %12 {offsets = [2, 0], sizes = [1, 128], strides = [1, 1]} : vector<9x128xf32> to vector<1x128xf32>
    %86 = vector.shape_cast %85 : vector<1x128xf32> to vector<1x128xf32>
    %87 = vector.broadcast %86 : vector<1x128xf32> to vector<4x128xf32>
    %88 = arith.select %80, %87, %41 : vector<4x128xi1>, vector<4x128xf32>
    %89 = vector.extract_strided_slice %13 {offsets = [2, 0], sizes = [1, 128], strides = [1, 1]} : vector<9x128xf32> to vector<1x128xf32>
    %90 = vector.shape_cast %89 : vector<1x128xf32> to vector<1x128xf32>
    %91 = vector.broadcast %90 : vector<1x128xf32> to vector<4x128xf32>
    %92 = arith.select %80, %91, %47 : vector<4x128xi1>, vector<4x128xf32>
    %93 = vector.extract_strided_slice %14 {offsets = [2, 0], sizes = [1, 128], strides = [1, 1]} : vector<9x128xf32> to vector<1x128xf32>
    %94 = vector.shape_cast %93 : vector<1x128xf32> to vector<1x128xf32>
    %95 = vector.broadcast %94 : vector<1x128xf32> to vector<4x128xf32>
    %96 = arith.select %80, %95, %53 : vector<4x128xi1>, vector<4x128xf32>
    %97 = vector.extract_strided_slice %15 {offsets = [2, 0], sizes = [1, 128], strides = [1, 1]} : vector<9x128xf32> to vector<1x128xf32>
    %98 = vector.shape_cast %97 : vector<1x128xf32> to vector<1x128xf32>
    %99 = vector.broadcast %98 : vector<1x128xf32> to vector<4x128xf32>
    %100 = arith.select %80, %99, %59 : vector<4x128xi1>, vector<4x128xf32>
    %101 = vector.extract_strided_slice %16 {offsets = [2, 0], sizes = [1, 128], strides = [1, 1]} : vector<9x128xf32> to vector<1x128xf32>
    %102 = vector.shape_cast %101 : vector<1x128xf32> to vector<1x128xf32>
    %103 = vector.broadcast %102 : vector<1x128xf32> to vector<4x128xf32>
    %104 = arith.select %80, %103, %65 : vector<4x128xi1>, vector<4x128xf32>
    %105 = vector.extract_strided_slice %17 {offsets = [2, 0], sizes = [1, 128], strides = [1, 1]} : vector<9x128xf32> to vector<1x128xf32>
    %106 = vector.shape_cast %105 : vector<1x128xf32> to vector<1x128xf32>
    %107 = vector.broadcast %106 : vector<1x128xf32> to vector<4x128xf32>
    %108 = arith.select %80, %107, %71 : vector<4x128xi1>, vector<4x128xf32>
    %109 = vector.extract_strided_slice %18 {offsets = [2, 0], sizes = [1, 128], strides = [1, 1]} : vector<9x128xf32> to vector<1x128xf32>
    %110 = vector.shape_cast %109 : vector<1x128xf32> to vector<1x128xf32>
    %111 = vector.broadcast %110 : vector<1x128xf32> to vector<4x128xf32>
    %112 = arith.select %80, %111, %77 : vector<4x128xi1>, vector<4x128xf32>
    %113 = vector.extract_strided_slice %10 {offsets = [2, 0], sizes = [1, 128], strides = [1, 1]} : vector<8x128xf32> to vector<1x128xf32>
    %114 = vector.broadcast %113 : vector<1x128xf32> to vector<4x128xf32>
    %115 = arith.cmpf olt, %114, %9 : vector<4x128xf32>
    %116 = vector.extract_strided_slice %11 {offsets = [3, 0], sizes = [1, 128], strides = [1, 1]} : vector<9x128xf32> to vector<1x128xf32>
    %117 = vector.shape_cast %116 : vector<1x128xf32> to vector<1x128xf32>
    %118 = vector.broadcast %117 : vector<1x128xf32> to vector<4x128xf32>
    %119 = arith.select %115, %118, %84 : vector<4x128xi1>, vector<4x128xf32>
    %120 = vector.extract_strided_slice %12 {offsets = [3, 0], sizes = [1, 128], strides = [1, 1]} : vector<9x128xf32> to vector<1x128xf32>
    %121 = vector.shape_cast %120 : vector<1x128xf32> to vector<1x128xf32>
    %122 = vector.broadcast %121 : vector<1x128xf32> to vector<4x128xf32>
    %123 = arith.select %115, %122, %88 : vector<4x128xi1>, vector<4x128xf32>
    %124 = vector.extract_strided_slice %13 {offsets = [3, 0], sizes = [1, 128], strides = [1, 1]} : vector<9x128xf32> to vector<1x128xf32>
    %125 = vector.shape_cast %124 : vector<1x128xf32> to vector<1x128xf32>
    %126 = vector.broadcast %125 : vector<1x128xf32> to vector<4x128xf32>
    %127 = arith.select %115, %126, %92 : vector<4x128xi1>, vector<4x128xf32>
    %128 = vector.extract_strided_slice %14 {offsets = [3, 0], sizes = [1, 128], strides = [1, 1]} : vector<9x128xf32> to vector<1x128xf32>
    %129 = vector.shape_cast %128 : vector<1x128xf32> to vector<1x128xf32>
    %130 = vector.broadcast %129 : vector<1x128xf32> to vector<4x128xf32>
    %131 = arith.select %115, %130, %96 : vector<4x128xi1>, vector<4x128xf32>
    %132 = vector.extract_strided_slice %15 {offsets = [3, 0], sizes = [1, 128], strides = [1, 1]} : vector<9x128xf32> to vector<1x128xf32>
    %133 = vector.shape_cast %132 : vector<1x128xf32> to vector<1x128xf32>
    %134 = vector.broadcast %133 : vector<1x128xf32> to vector<4x128xf32>
    %135 = arith.select %115, %134, %100 : vector<4x128xi1>, vector<4x128xf32>
    %136 = vector.extract_strided_slice %16 {offsets = [3, 0], sizes = [1, 128], strides = [1, 1]} : vector<9x128xf32> to vector<1x128xf32>
    %137 = vector.shape_cast %136 : vector<1x128xf32> to vector<1x128xf32>
    %138 = vector.broadcast %137 : vector<1x128xf32> to vector<4x128xf32>
    %139 = arith.select %115, %138, %104 : vector<4x128xi1>, vector<4x128xf32>
    %140 = vector.extract_strided_slice %17 {offsets = [3, 0], sizes = [1, 128], strides = [1, 1]} : vector<9x128xf32> to vector<1x128xf32>
    %141 = vector.shape_cast %140 : vector<1x128xf32> to vector<1x128xf32>
    %142 = vector.broadcast %141 : vector<1x128xf32> to vector<4x128xf32>
    %143 = arith.select %115, %142, %108 : vector<4x128xi1>, vector<4x128xf32>
    %144 = vector.extract_strided_slice %18 {offsets = [3, 0], sizes = [1, 128], strides = [1, 1]} : vector<9x128xf32> to vector<1x128xf32>
    %145 = vector.shape_cast %144 : vector<1x128xf32> to vector<1x128xf32>
    %146 = vector.broadcast %145 : vector<1x128xf32> to vector<4x128xf32>
    %147 = arith.select %115, %146, %112 : vector<4x128xi1>, vector<4x128xf32>
    %148 = vector.extract_strided_slice %10 {offsets = [3, 0], sizes = [1, 128], strides = [1, 1]} : vector<8x128xf32> to vector<1x128xf32>
    %149 = vector.broadcast %148 : vector<1x128xf32> to vector<4x128xf32>
    %150 = arith.cmpf olt, %149, %9 : vector<4x128xf32>
    %151 = vector.extract_strided_slice %11 {offsets = [4, 0], sizes = [1, 128], strides = [1, 1]} : vector<9x128xf32> to vector<1x128xf32>
    %152 = vector.shape_cast %151 : vector<1x128xf32> to vector<1x128xf32>
    %153 = vector.broadcast %152 : vector<1x128xf32> to vector<4x128xf32>
    %154 = arith.select %150, %153, %119 : vector<4x128xi1>, vector<4x128xf32>
    %155 = vector.extract_strided_slice %12 {offsets = [4, 0], sizes = [1, 128], strides = [1, 1]} : vector<9x128xf32> to vector<1x128xf32>
    %156 = vector.shape_cast %155 : vector<1x128xf32> to vector<1x128xf32>
    %157 = vector.broadcast %156 : vector<1x128xf32> to vector<4x128xf32>
    %158 = arith.select %150, %157, %123 : vector<4x128xi1>, vector<4x128xf32>
    %159 = vector.extract_strided_slice %13 {offsets = [4, 0], sizes = [1, 128], strides = [1, 1]} : vector<9x128xf32> to vector<1x128xf32>
    %160 = vector.shape_cast %159 : vector<1x128xf32> to vector<1x128xf32>
    %161 = vector.broadcast %160 : vector<1x128xf32> to vector<4x128xf32>
    %162 = arith.select %150, %161, %127 : vector<4x128xi1>, vector<4x128xf32>
    %163 = vector.extract_strided_slice %14 {offsets = [4, 0], sizes = [1, 128], strides = [1, 1]} : vector<9x128xf32> to vector<1x128xf32>
    %164 = vector.shape_cast %163 : vector<1x128xf32> to vector<1x128xf32>
    %165 = vector.broadcast %164 : vector<1x128xf32> to vector<4x128xf32>
    %166 = arith.select %150, %165, %131 : vector<4x128xi1>, vector<4x128xf32>
    %167 = vector.extract_strided_slice %15 {offsets = [4, 0], sizes = [1, 128], strides = [1, 1]} : vector<9x128xf32> to vector<1x128xf32>
    %168 = vector.shape_cast %167 : vector<1x128xf32> to vector<1x128xf32>
    %169 = vector.broadcast %168 : vector<1x128xf32> to vector<4x128xf32>
    %170 = arith.select %150, %169, %135 : vector<4x128xi1>, vector<4x128xf32>
    %171 = vector.extract_strided_slice %16 {offsets = [4, 0], sizes = [1, 128], strides = [1, 1]} : vector<9x128xf32> to vector<1x128xf32>
    %172 = vector.shape_cast %171 : vector<1x128xf32> to vector<1x128xf32>
    %173 = vector.broadcast %172 : vector<1x128xf32> to vector<4x128xf32>
    %174 = arith.select %150, %173, %139 : vector<4x128xi1>, vector<4x128xf32>
    %175 = vector.extract_strided_slice %17 {offsets = [4, 0], sizes = [1, 128], strides = [1, 1]} : vector<9x128xf32> to vector<1x128xf32>
    %176 = vector.shape_cast %175 : vector<1x128xf32> to vector<1x128xf32>
    %177 = vector.broadcast %176 : vector<1x128xf32> to vector<4x128xf32>
    %178 = arith.select %150, %177, %143 : vector<4x128xi1>, vector<4x128xf32>
    %179 = vector.extract_strided_slice %18 {offsets = [4, 0], sizes = [1, 128], strides = [1, 1]} : vector<9x128xf32> to vector<1x128xf32>
    %180 = vector.shape_cast %179 : vector<1x128xf32> to vector<1x128xf32>
    %181 = vector.broadcast %180 : vector<1x128xf32> to vector<4x128xf32>
    %182 = arith.select %150, %181, %147 : vector<4x128xi1>, vector<4x128xf32>
    %183 = vector.extract_strided_slice %10 {offsets = [4, 0], sizes = [1, 128], strides = [1, 1]} : vector<8x128xf32> to vector<1x128xf32>
    %184 = vector.broadcast %183 : vector<1x128xf32> to vector<4x128xf32>
    %185 = arith.cmpf olt, %184, %9 : vector<4x128xf32>
    %186 = vector.extract_strided_slice %11 {offsets = [5, 0], sizes = [1, 128], strides = [1, 1]} : vector<9x128xf32> to vector<1x128xf32>
    %187 = vector.shape_cast %186 : vector<1x128xf32> to vector<1x128xf32>
    %188 = vector.broadcast %187 : vector<1x128xf32> to vector<4x128xf32>
    %189 = arith.select %185, %188, %154 : vector<4x128xi1>, vector<4x128xf32>
    %190 = vector.extract_strided_slice %12 {offsets = [5, 0], sizes = [1, 128], strides = [1, 1]} : vector<9x128xf32> to vector<1x128xf32>
    %191 = vector.shape_cast %190 : vector<1x128xf32> to vector<1x128xf32>
    %192 = vector.broadcast %191 : vector<1x128xf32> to vector<4x128xf32>
    %193 = arith.select %185, %192, %158 : vector<4x128xi1>, vector<4x128xf32>
    %194 = vector.extract_strided_slice %13 {offsets = [5, 0], sizes = [1, 128], strides = [1, 1]} : vector<9x128xf32> to vector<1x128xf32>
    %195 = vector.shape_cast %194 : vector<1x128xf32> to vector<1x128xf32>
    %196 = vector.broadcast %195 : vector<1x128xf32> to vector<4x128xf32>
    %197 = arith.select %185, %196, %162 : vector<4x128xi1>, vector<4x128xf32>
    %198 = vector.extract_strided_slice %14 {offsets = [5, 0], sizes = [1, 128], strides = [1, 1]} : vector<9x128xf32> to vector<1x128xf32>
    %199 = vector.shape_cast %198 : vector<1x128xf32> to vector<1x128xf32>
    %200 = vector.broadcast %199 : vector<1x128xf32> to vector<4x128xf32>
    %201 = arith.select %185, %200, %166 : vector<4x128xi1>, vector<4x128xf32>
    %202 = vector.extract_strided_slice %15 {offsets = [5, 0], sizes = [1, 128], strides = [1, 1]} : vector<9x128xf32> to vector<1x128xf32>
    %203 = vector.shape_cast %202 : vector<1x128xf32> to vector<1x128xf32>
    %204 = vector.broadcast %203 : vector<1x128xf32> to vector<4x128xf32>
    %205 = arith.select %185, %204, %170 : vector<4x128xi1>, vector<4x128xf32>
    %206 = vector.extract_strided_slice %16 {offsets = [5, 0], sizes = [1, 128], strides = [1, 1]} : vector<9x128xf32> to vector<1x128xf32>
    %207 = vector.shape_cast %206 : vector<1x128xf32> to vector<1x128xf32>
    %208 = vector.broadcast %207 : vector<1x128xf32> to vector<4x128xf32>
    %209 = arith.select %185, %208, %174 : vector<4x128xi1>, vector<4x128xf32>
    %210 = vector.extract_strided_slice %17 {offsets = [5, 0], sizes = [1, 128], strides = [1, 1]} : vector<9x128xf32> to vector<1x128xf32>
    %211 = vector.shape_cast %210 : vector<1x128xf32> to vector<1x128xf32>
    %212 = vector.broadcast %211 : vector<1x128xf32> to vector<4x128xf32>
    %213 = arith.select %185, %212, %178 : vector<4x128xi1>, vector<4x128xf32>
    %214 = vector.extract_strided_slice %18 {offsets = [5, 0], sizes = [1, 128], strides = [1, 1]} : vector<9x128xf32> to vector<1x128xf32>
    %215 = vector.shape_cast %214 : vector<1x128xf32> to vector<1x128xf32>
    %216 = vector.broadcast %215 : vector<1x128xf32> to vector<4x128xf32>
    %217 = arith.select %185, %216, %182 : vector<4x128xi1>, vector<4x128xf32>
    %218 = vector.extract_strided_slice %10 {offsets = [5, 0], sizes = [1, 128], strides = [1, 1]} : vector<8x128xf32> to vector<1x128xf32>
    %219 = vector.broadcast %218 : vector<1x128xf32> to vector<4x128xf32>
    %220 = arith.cmpf olt, %219, %9 : vector<4x128xf32>
    %221 = vector.extract_strided_slice %11 {offsets = [6, 0], sizes = [1, 128], strides = [1, 1]} : vector<9x128xf32> to vector<1x128xf32>
    %222 = vector.shape_cast %221 : vector<1x128xf32> to vector<1x128xf32>
    %223 = vector.broadcast %222 : vector<1x128xf32> to vector<4x128xf32>
    %224 = arith.select %220, %223, %189 : vector<4x128xi1>, vector<4x128xf32>
    %225 = vector.extract_strided_slice %12 {offsets = [6, 0], sizes = [1, 128], strides = [1, 1]} : vector<9x128xf32> to vector<1x128xf32>
    %226 = vector.shape_cast %225 : vector<1x128xf32> to vector<1x128xf32>
    %227 = vector.broadcast %226 : vector<1x128xf32> to vector<4x128xf32>
    %228 = arith.select %220, %227, %193 : vector<4x128xi1>, vector<4x128xf32>
    %229 = vector.extract_strided_slice %13 {offsets = [6, 0], sizes = [1, 128], strides = [1, 1]} : vector<9x128xf32> to vector<1x128xf32>
    %230 = vector.shape_cast %229 : vector<1x128xf32> to vector<1x128xf32>
    %231 = vector.broadcast %230 : vector<1x128xf32> to vector<4x128xf32>
    %232 = arith.select %220, %231, %197 : vector<4x128xi1>, vector<4x128xf32>
    %233 = vector.extract_strided_slice %14 {offsets = [6, 0], sizes = [1, 128], strides = [1, 1]} : vector<9x128xf32> to vector<1x128xf32>
    %234 = vector.shape_cast %233 : vector<1x128xf32> to vector<1x128xf32>
    %235 = vector.broadcast %234 : vector<1x128xf32> to vector<4x128xf32>
    %236 = arith.select %220, %235, %201 : vector<4x128xi1>, vector<4x128xf32>
    %237 = vector.extract_strided_slice %15 {offsets = [6, 0], sizes = [1, 128], strides = [1, 1]} : vector<9x128xf32> to vector<1x128xf32>
    %238 = vector.shape_cast %237 : vector<1x128xf32> to vector<1x128xf32>
    %239 = vector.broadcast %238 : vector<1x128xf32> to vector<4x128xf32>
    %240 = arith.select %220, %239, %205 : vector<4x128xi1>, vector<4x128xf32>
    %241 = vector.extract_strided_slice %16 {offsets = [6, 0], sizes = [1, 128], strides = [1, 1]} : vector<9x128xf32> to vector<1x128xf32>
    %242 = vector.shape_cast %241 : vector<1x128xf32> to vector<1x128xf32>
    %243 = vector.broadcast %242 : vector<1x128xf32> to vector<4x128xf32>
    %244 = arith.select %220, %243, %209 : vector<4x128xi1>, vector<4x128xf32>
    %245 = vector.extract_strided_slice %17 {offsets = [6, 0], sizes = [1, 128], strides = [1, 1]} : vector<9x128xf32> to vector<1x128xf32>
    %246 = vector.shape_cast %245 : vector<1x128xf32> to vector<1x128xf32>
    %247 = vector.broadcast %246 : vector<1x128xf32> to vector<4x128xf32>
    %248 = arith.select %220, %247, %213 : vector<4x128xi1>, vector<4x128xf32>
    %249 = vector.extract_strided_slice %18 {offsets = [6, 0], sizes = [1, 128], strides = [1, 1]} : vector<9x128xf32> to vector<1x128xf32>
    %250 = vector.shape_cast %249 : vector<1x128xf32> to vector<1x128xf32>
    %251 = vector.broadcast %250 : vector<1x128xf32> to vector<4x128xf32>
    %252 = arith.select %220, %251, %217 : vector<4x128xi1>, vector<4x128xf32>
    %253 = vector.extract_strided_slice %10 {offsets = [6, 0], sizes = [1, 128], strides = [1, 1]} : vector<8x128xf32> to vector<1x128xf32>
    %254 = vector.broadcast %253 : vector<1x128xf32> to vector<4x128xf32>
    %255 = arith.cmpf olt, %254, %9 : vector<4x128xf32>
    %256 = vector.extract_strided_slice %11 {offsets = [7, 0], sizes = [1, 128], strides = [1, 1]} : vector<9x128xf32> to vector<1x128xf32>
    %257 = vector.shape_cast %256 : vector<1x128xf32> to vector<1x128xf32>
    %258 = vector.broadcast %257 : vector<1x128xf32> to vector<4x128xf32>
    %259 = arith.select %255, %258, %224 : vector<4x128xi1>, vector<4x128xf32>
    %260 = vector.extract_strided_slice %12 {offsets = [7, 0], sizes = [1, 128], strides = [1, 1]} : vector<9x128xf32> to vector<1x128xf32>
    %261 = vector.shape_cast %260 : vector<1x128xf32> to vector<1x128xf32>
    %262 = vector.broadcast %261 : vector<1x128xf32> to vector<4x128xf32>
    %263 = arith.select %255, %262, %228 : vector<4x128xi1>, vector<4x128xf32>
    %264 = vector.extract_strided_slice %13 {offsets = [7, 0], sizes = [1, 128], strides = [1, 1]} : vector<9x128xf32> to vector<1x128xf32>
    %265 = vector.shape_cast %264 : vector<1x128xf32> to vector<1x128xf32>
    %266 = vector.broadcast %265 : vector<1x128xf32> to vector<4x128xf32>
    %267 = arith.select %255, %266, %232 : vector<4x128xi1>, vector<4x128xf32>
    %268 = vector.extract_strided_slice %14 {offsets = [7, 0], sizes = [1, 128], strides = [1, 1]} : vector<9x128xf32> to vector<1x128xf32>
    %269 = vector.shape_cast %268 : vector<1x128xf32> to vector<1x128xf32>
    %270 = vector.broadcast %269 : vector<1x128xf32> to vector<4x128xf32>
    %271 = arith.select %255, %270, %236 : vector<4x128xi1>, vector<4x128xf32>
    %272 = vector.extract_strided_slice %15 {offsets = [7, 0], sizes = [1, 128], strides = [1, 1]} : vector<9x128xf32> to vector<1x128xf32>
    %273 = vector.shape_cast %272 : vector<1x128xf32> to vector<1x128xf32>
    %274 = vector.broadcast %273 : vector<1x128xf32> to vector<4x128xf32>
    %275 = arith.select %255, %274, %240 : vector<4x128xi1>, vector<4x128xf32>
    %276 = vector.extract_strided_slice %16 {offsets = [7, 0], sizes = [1, 128], strides = [1, 1]} : vector<9x128xf32> to vector<1x128xf32>
    %277 = vector.shape_cast %276 : vector<1x128xf32> to vector<1x128xf32>
    %278 = vector.broadcast %277 : vector<1x128xf32> to vector<4x128xf32>
    %279 = arith.select %255, %278, %244 : vector<4x128xi1>, vector<4x128xf32>
    %280 = vector.extract_strided_slice %17 {offsets = [7, 0], sizes = [1, 128], strides = [1, 1]} : vector<9x128xf32> to vector<1x128xf32>
    %281 = vector.shape_cast %280 : vector<1x128xf32> to vector<1x128xf32>
    %282 = vector.broadcast %281 : vector<1x128xf32> to vector<4x128xf32>
    %283 = arith.select %255, %282, %248 : vector<4x128xi1>, vector<4x128xf32>
    %284 = vector.extract_strided_slice %18 {offsets = [7, 0], sizes = [1, 128], strides = [1, 1]} : vector<9x128xf32> to vector<1x128xf32>
    %285 = vector.shape_cast %284 : vector<1x128xf32> to vector<1x128xf32>
    %286 = vector.broadcast %285 : vector<1x128xf32> to vector<4x128xf32>
    %287 = arith.select %255, %286, %252 : vector<4x128xi1>, vector<4x128xf32>
    %288 = vector.extract_strided_slice %10 {offsets = [7, 0], sizes = [1, 128], strides = [1, 1]} : vector<8x128xf32> to vector<1x128xf32>
    %289 = vector.broadcast %288 : vector<1x128xf32> to vector<4x128xf32>
    %290 = arith.cmpf olt, %289, %9 : vector<4x128xf32>
    %291 = vector.extract_strided_slice %11 {offsets = [8, 0], sizes = [1, 128], strides = [1, 1]} : vector<9x128xf32> to vector<1x128xf32>
    %292 = vector.shape_cast %291 : vector<1x128xf32> to vector<1x128xf32>
    %293 = vector.broadcast %292 : vector<1x128xf32> to vector<4x128xf32>
    %294 = arith.select %290, %293, %259 : vector<4x128xi1>, vector<4x128xf32>
    %295 = vector.extract_strided_slice %12 {offsets = [8, 0], sizes = [1, 128], strides = [1, 1]} : vector<9x128xf32> to vector<1x128xf32>
    %296 = vector.shape_cast %295 : vector<1x128xf32> to vector<1x128xf32>
    %297 = vector.broadcast %296 : vector<1x128xf32> to vector<4x128xf32>
    %298 = arith.select %290, %297, %263 : vector<4x128xi1>, vector<4x128xf32>
    %299 = vector.extract_strided_slice %13 {offsets = [8, 0], sizes = [1, 128], strides = [1, 1]} : vector<9x128xf32> to vector<1x128xf32>
    %300 = vector.shape_cast %299 : vector<1x128xf32> to vector<1x128xf32>
    %301 = vector.broadcast %300 : vector<1x128xf32> to vector<4x128xf32>
    %302 = arith.select %290, %301, %267 : vector<4x128xi1>, vector<4x128xf32>
    %303 = vector.extract_strided_slice %14 {offsets = [8, 0], sizes = [1, 128], strides = [1, 1]} : vector<9x128xf32> to vector<1x128xf32>
    %304 = vector.shape_cast %303 : vector<1x128xf32> to vector<1x128xf32>
    %305 = vector.broadcast %304 : vector<1x128xf32> to vector<4x128xf32>
    %306 = arith.select %290, %305, %271 : vector<4x128xi1>, vector<4x128xf32>
    %307 = vector.extract_strided_slice %15 {offsets = [8, 0], sizes = [1, 128], strides = [1, 1]} : vector<9x128xf32> to vector<1x128xf32>
    %308 = vector.shape_cast %307 : vector<1x128xf32> to vector<1x128xf32>
    %309 = vector.broadcast %308 : vector<1x128xf32> to vector<4x128xf32>
    %310 = arith.select %290, %309, %275 : vector<4x128xi1>, vector<4x128xf32>
    %311 = vector.extract_strided_slice %16 {offsets = [8, 0], sizes = [1, 128], strides = [1, 1]} : vector<9x128xf32> to vector<1x128xf32>
    %312 = vector.shape_cast %311 : vector<1x128xf32> to vector<1x128xf32>
    %313 = vector.broadcast %312 : vector<1x128xf32> to vector<4x128xf32>
    %314 = arith.select %290, %313, %279 : vector<4x128xi1>, vector<4x128xf32>
    %315 = vector.extract_strided_slice %17 {offsets = [8, 0], sizes = [1, 128], strides = [1, 1]} : vector<9x128xf32> to vector<1x128xf32>
    %316 = vector.shape_cast %315 : vector<1x128xf32> to vector<1x128xf32>
    %317 = vector.broadcast %316 : vector<1x128xf32> to vector<4x128xf32>
    %318 = arith.select %290, %317, %283 : vector<4x128xi1>, vector<4x128xf32>
    %319 = vector.extract_strided_slice %18 {offsets = [8, 0], sizes = [1, 128], strides = [1, 1]} : vector<9x128xf32> to vector<1x128xf32>
    %320 = vector.shape_cast %319 : vector<1x128xf32> to vector<1x128xf32>
    %321 = vector.broadcast %320 : vector<1x128xf32> to vector<4x128xf32>
    %322 = arith.select %290, %321, %287 : vector<4x128xi1>, vector<4x128xf32>
    %c0_25 = arith.constant 0 : index
    %c0_26 = arith.constant 0 : index
    %323 = vector.load %arg14[%c0_25, %c0_26] : memref<1x128xf32, #tpu.memory_space<vmem>>, vector<1x128xf32>
    %324 = vector.broadcast %323 : vector<1x128xf32> to vector<4x128xf32>
    %325 = arith.mulf %324, %9 : vector<4x128xf32>
    %326 = arith.subf %294, %325 : vector<4x128xf32>
    %327 = math.exp %326 : vector<4x128xf32>
    %328 = arith.subf %325, %298 : vector<4x128xf32>
    %329 = math.exp %328 : vector<4x128xf32>
    %330 = arith.mulf %327, %327 : vector<4x128xf32>
    %cst_27 = arith.constant 1.000000e+00 : f32
    %331 = vector.broadcast %cst_27 : f32 to vector<4x128xf32>
    %332 = arith.subf %331, %330 : vector<4x128xf32>
    %333 = arith.mulf %329, %329 : vector<4x128xf32>
    %cst_28 = arith.constant 1.000000e+00 : f32
    %334 = vector.broadcast %cst_28 : f32 to vector<4x128xf32>
    %335 = arith.subf %334, %333 : vector<4x128xf32>
    %336 = arith.mulf %335, %327 : vector<4x128xf32>
    %337 = arith.mulf %332, %329 : vector<4x128xf32>
    %338 = arith.mulf %337, %306 : vector<4x128xf32>
    %339 = arith.mulf %302, %327 : vector<4x128xf32>
    %340 = arith.addf %338, %339 : vector<4x128xf32>
    %341 = arith.mulf %336, %336 : vector<4x128xf32>
    %342 = arith.mulf %341, %310 : vector<4x128xf32>
    %343 = arith.mulf %337, %337 : vector<4x128xf32>
    %344 = arith.mulf %343, %314 : vector<4x128xf32>
    %345 = arith.addf %342, %344 : vector<4x128xf32>
    %346 = arith.mulf %336, %337 : vector<4x128xf32>
    %347 = arith.mulf %346, %318 : vector<4x128xf32>
    %348 = arith.addf %345, %347 : vector<4x128xf32>
    %349 = arith.mulf %322, %335 : vector<4x128xf32>
    %350 = arith.mulf %349, %332 : vector<4x128xf32>
    %351 = arith.addf %348, %350 : vector<4x128xf32>
    %c0_29 = arith.constant 0 : index
    %c0_30 = arith.constant 0 : index
    %352 = vector.load %arg15[%c0_29, %c0_30] : memref<128x128xf32, #tpu.memory_space<vmem>>, vector<128x128xf32>
    %cst_31 = arith.constant dense<0.000000e+00> : vector<4x128xf32>
    %353 = tpu.matmul %340, %352, %cst_31 {dimension_numbers = #tpu.dot_dimension_numbers<[1], [0], [0], [1], [0, 0, 1, 1], [], []>} : vector<4x128xf32>, vector<128x128xf32>, vector<4x128xf32> -> vector<4x128xf32>
    %c0_32 = arith.constant 0 : index
    %c0_33 = arith.constant 0 : index
    %354 = vector.load %arg17[%c0_32, %c0_33] : memref<1x128xf32, #tpu.memory_space<vmem>>, vector<1x128xf32>
    %355 = vector.broadcast %354 : vector<1x128xf32> to vector<4x128xf32>
    %356 = arith.addf %353, %355 : vector<4x128xf32>
    %c0_34 = arith.constant 0 : index
    %c0_35 = arith.constant 0 : index
    %357 = vector.load %arg16[%c0_34, %c0_35] : memref<128x128xf32, #tpu.memory_space<vmem>>, vector<128x128xf32>
    %cst_36 = arith.constant dense<0.000000e+00> : vector<4x128xf32>
    %358 = tpu.matmul %351, %357, %cst_36 {dimension_numbers = #tpu.dot_dimension_numbers<[1], [0], [0], [1], [0, 0, 1, 1], [], []>} : vector<4x128xf32>, vector<128x128xf32>, vector<4x128xf32> -> vector<4x128xf32>
    %cst_37 = arith.constant 9.99999974E-6 : f32
    %359 = vector.broadcast %cst_37 : f32 to vector<4x128xf32>
    %360 = arith.maximumf %358, %359 : vector<4x128xf32>
    %361 = math.sqrt %360 : vector<4x128xf32>
    %c0_38 = arith.constant 0 : index
    %c0_39 = arith.constant 0 : index
    %362 = vector.load %arg2[%c0_38, %c0_39] : memref<4x128xf32, #tpu.memory_space<vmem>>, vector<4x128xf32>
    %363 = arith.mulf %361, %362 : vector<4x128xf32>
    %364 = arith.addf %356, %363 : vector<4x128xf32>
    %c0_40 = arith.constant 0 : index
    %c0_41 = arith.constant 0 : index
    %365 = vector.load %arg18[%c0_40, %c0_41] : memref<4x128xf32, #tpu.memory_space<vmem>>, vector<4x128xf32>
    tpu.vector_store %arg18[%c0_40, %c0_41], %364 {strides = array<i32>} : memref<4x128xf32, #tpu.memory_space<vmem>>, vector<4x128xf32>,
    return
  }
  func.func @transform_0(%arg0: i32) -> (i32, i32) {
    %c0_i32 = arith.constant 0 : i32
    %c0_i32_0 = arith.constant 0 : i32
    return %arg0, %c0_i32 : i32, i32
  }
  func.func @transform_1(%arg0: i32) -> (i32, i32) {
    %c0_i32 = arith.constant 0 : i32
    %c0_i32_0 = arith.constant 0 : i32
    return %arg0, %c0_i32 : i32, i32
  }
  func.func @transform_2(%arg0: i32) -> (i32, i32) {
    %c0_i32 = arith.constant 0 : i32
    %c0_i32_0 = arith.constant 0 : i32
    %c0_i32_1 = arith.constant 0 : i32
    return %c0_i32, %c0_i32_0 : i32, i32
  }
  func.func @transform_3(%arg0: i32) -> (i32, i32) {
    %c0_i32 = arith.constant 0 : i32
    %c0_i32_0 = arith.constant 0 : i32
    %c0_i32_1 = arith.constant 0 : i32
    return %c0_i32, %c0_i32_0 : i32, i32
  }
  func.func @transform_4(%arg0: i32) -> (i32, i32) {
    %c0_i32 = arith.constant 0 : i32
    %c0_i32_0 = arith.constant 0 : i32
    %c0_i32_1 = arith.constant 0 : i32
    return %c0_i32, %c0_i32_0 : i32, i32
  }
  func.func @transform_5(%arg0: i32) -> (i32, i32) {
    %c0_i32 = arith.constant 0 : i32
    %c0_i32_0 = arith.constant 0 : i32
    %c0_i32_1 = arith.constant 0 : i32
    return %c0_i32, %c0_i32_0 : i32, i32
  }
  func.func @transform_6(%arg0: i32) -> (i32, i32) {
    %c0_i32 = arith.constant 0 : i32
    %c0_i32_0 = arith.constant 0 : i32
    %c0_i32_1 = arith.constant 0 : i32
    return %c0_i32, %c0_i32_0 : i32, i32
  }
  func.func @transform_7(%arg0: i32) -> (i32, i32) {
    %c0_i32 = arith.constant 0 : i32
    %c0_i32_0 = arith.constant 0 : i32
    %c0_i32_1 = arith.constant 0 : i32
    return %c0_i32, %c0_i32_0 : i32, i32
  }
  func.func @transform_8(%arg0: i32) -> (i32, i32) {
    %c0_i32 = arith.constant 0 : i32
    %c0_i32_0 = arith.constant 0 : i32
    %c0_i32_1 = arith.constant 0 : i32
    return %c0_i32, %c0_i32_0 : i32, i32
  }
  func.func @transform_9(%arg0: i32) -> (i32, i32) {
    %c0_i32 = arith.constant 0 : i32
    %c0_i32_0 = arith.constant 0 : i32
    %c0_i32_1 = arith.constant 0 : i32
    return %c0_i32, %c0_i32_0 : i32, i32
  }
  func.func @transform_10(%arg0: i32) -> (i32, i32) {
    %c0_i32 = arith.constant 0 : i32
    %c0_i32_0 = arith.constant 0 : i32
    %c0_i32_1 = arith.constant 0 : i32
    return %c0_i32, %c0_i32_0 : i32, i32
  }
  func.func @transform_11(%arg0: i32) -> (i32, i32) {
    %c0_i32 = arith.constant 0 : i32
    %c0_i32_0 = arith.constant 0 : i32
    %c0_i32_1 = arith.constant 0 : i32
    return %c0_i32, %c0_i32_0 : i32, i32
  }
  func.func @transform_12(%arg0: i32) -> (i32, i32) {
    %c0_i32 = arith.constant 0 : i32
    %c0_i32_0 = arith.constant 0 : i32
    %c0_i32_1 = arith.constant 0 : i32
    return %c0_i32, %c0_i32_0 : i32, i32
  }
  func.func @transform_13(%arg0: i32) -> (i32, i32) {
    %c0_i32 = arith.constant 0 : i32
    %c0_i32_0 = arith.constant 0 : i32
    %c0_i32_1 = arith.constant 0 : i32
    return %c0_i32, %c0_i32_0 : i32, i32
  }
  func.func @transform_14(%arg0: i32) -> (i32, i32) {
    %c0_i32 = arith.constant 0 : i32
    %c0_i32_0 = arith.constant 0 : i32
    %c0_i32_1 = arith.constant 0 : i32
    return %c0_i32, %c0_i32_0 : i32, i32
  }
  func.func @transform_15(%arg0: i32) -> (i32, i32) {
    %c0_i32 = arith.constant 0 : i32
    %c0_i32_0 = arith.constant 0 : i32
    %c0_i32_1 = arith.constant 0 : i32
    return %c0_i32, %c0_i32_0 : i32, i32
  }
  func.func @transform_16(%arg0: i32) -> (i32, i32) {
    %c0_i32 = arith.constant 0 : i32
    %c0_i32_0 = arith.constant 0 : i32
    %c0_i32_1 = arith.constant 0 : i32
    return %c0_i32, %c0_i32_0 : i32, i32
  }
  func.func @transform_17(%arg0: i32) -> (i32, i32) {
    %c0_i32 = arith.constant 0 : i32
    %c0_i32_0 = arith.constant 0 : i32
    return %arg0, %c0_i32 : i32, i32
  }
}

</mosaic_0001>

<llo_original>
// kernel: tpu_custom_call.1
$region0: #{tpu_custom_call.1}
  #allocation0 [shape = 'u32[]', space=smem, size = 0x4, offset = 0x4, fixed_abs, tag = 'smem constant byte address 0x4 - core index']
  #allocation1 [shape = 'u32[144,128]{1,0:T(1,128)}', space=vmem, size = 0x12000, scoped, tag = 'internal scratch']
  %s0 = inlined_call_operand.hbm [shape: f32[4,64], index: 0, kind: input, shape index: {}]
  %s1 = inlined_call_operand.hbm [shape: f32[4,128], index: 1, kind: input, shape index: {}]
  %s2 = inlined_call_operand.hbm [shape: f32[64,128], index: 2, kind: input, shape index: {}]
  %s3 = inlined_call_operand.hbm [shape: f32[1,128], index: 3, kind: input, shape index: {}]
  %s4 = inlined_call_operand.hbm [shape: f32[8,128], index: 4, kind: input, shape index: {}]
  %s5 = inlined_call_operand.hbm [shape: f32[9,128], index: 5, kind: input, shape index: {}]
  %s6 = inlined_call_operand.hbm [shape: f32[9,128], index: 6, kind: input, shape index: {}]
  %s7 = inlined_call_operand.hbm [shape: f32[9,128], index: 7, kind: input, shape index: {}]
  %s8 = inlined_call_operand.hbm [shape: f32[9,128], index: 8, kind: input, shape index: {}]
  %s9 = inlined_call_operand.vmem [shape: f32[9,128], index: 9, kind: input, shape index: {}]
  %s10 = inlined_call_operand.hbm [shape: f32[9,128], index: 10, kind: input, shape index: {}]
  %s11 = inlined_call_operand.hbm [shape: f32[9,128], index: 11, kind: input, shape index: {}]
  %s12 = inlined_call_operand.hbm [shape: f32[9,128], index: 12, kind: input, shape index: {}]
  %s13 = inlined_call_operand.vmem [shape: f32[1,128], index: 13, kind: input, shape index: {}]
  %s14 = inlined_call_operand.hbm [shape: f32[128,128], index: 14, kind: input, shape index: {}]
  %s15 = inlined_call_operand.hbm [shape: f32[128,128], index: 15, kind: input, shape index: {}]
  %s16 = inlined_call_operand.vmem [shape: f32[1,128], index: 16, kind: input, shape index: {}]
  %s17 = inlined_call_operand.hbm [shape: f32[4,128], index: 17, kind: output, shape index: {}]
  %s18 = sld [smem:[#allocation0]]
  $region134: #{tpu_custom_call.1} parent=0
    _
  %s20 = ssub.s32 1, %s18
  %s21 = scalar_select 0, %s20, %s18
  $region1: #{tpu_custom_call.1} parent=0
    #allocation2 [shape = 'u8[2048]{0}', space=vmem, size = 0x800, scoped, tag = 'input window, operand 0, single buffered']
    #allocation3 [shape = 's32[1]{0}', space=sflag, size = 0x4, scoped, tag = 'scoped memory for tpu_custom_call.1']
    #allocation4 [shape = 's32[1]{0}', space=sflag, size = 0x4, scoped, tag = 'scoped memory for tpu_custom_call.1']
    #allocation5 [shape = 'u8[2048]{0}', space=vmem, size = 0x800, scoped, tag = 'input window, operand 1, single buffered']
    #allocation6 [shape = 's32[1]{0}', space=sflag, size = 0x4, scoped, tag = 'scoped memory for tpu_custom_call.1']
    #allocation7 [shape = 'u8[32768]{0}', space=vmem, size = 0x8000, scoped, tag = 'input window, operand 2, single buffered']
    #allocation8 [shape = 'u8[512]{0}', space=vmem, size = 0x400, scoped, tag = 'input window, operand 3, single buffered']
    #allocation9 [shape = 's32[1]{0}', space=sflag, size = 0x4, scoped, tag = 'scoped memory for tpu_custom_call.1']
    #allocation10 [shape = 'u8[4096]{0}', space=vmem, size = 0x1000, scoped, tag = 'input window, operand 4, single buffered']
    #allocation11 [shape = 'u8[8192]{0}', space=vmem, size = 0x2000, scoped, tag = 'input window, operand 5, single buffered']
    #allocation12 [shape = 's32[1]{0}', space=sflag, size = 0x4, scoped, tag = 'scoped memory for tpu_custom_call.1']
    #allocation13 [shape = 'u8[8192]{0}', space=vmem, size = 0x2000, scoped, tag = 'input window, operand 6, single buffered']
    #allocation14 [shape = 'u8[8192]{0}', space=vmem, size = 0x2000, scoped, tag = 'input window, operand 7, single buffered']
    #allocation15 [shape = 's32[1]{0}', space=sflag, size = 0x4, scoped, tag = 'scoped memory for tpu_custom_call.1']
    #allocation16 [shape = 'u8[8192]{0}', space=vmem, size = 0x2000, scoped, tag = 'input window, operand 8, single buffered']
    #allocation17 [shape = 'u8[8192]{0}', space=vmem, size = 0x2000, scoped, tag = 'input window, operand 10, single buffered']
    #allocation18 [shape = 's32[1]{0}', space=sflag, size = 0x4, scoped, tag = 'scoped memory for tpu_custom_call.1']
    #allocation19 [shape = 'u8[8192]{0}', space=vmem, size = 0x2000, scoped, tag = 'input window, operand 11, single buffered']
    #allocation20 [shape = 'u8[8192]{0}', space=vmem, size = 0x2000, scoped, tag = 'input window, operand 12, single buffered']
    #allocation21 [shape = 's32[1]{0}', space=sflag, size = 0x4, scoped, tag = 'scoped memory for tpu_custom_call.1']
    #allocation22 [shape = 'u8[65536]{0}', space=vmem, size = 0x10000, scoped, tag = 'input window, operand 14, single buffered']
    #allocation23 [shape = 'u8[65536]{0}', space=vmem, size = 0x10000, scoped, tag = 'input window, operand 15, single buffered']
    #allocation24 [shape = 's32[1]{0}', space=sflag, size = 0x4, scoped, tag = 'scoped memory for tpu_custom_call.1']
    #allocation25 [shape = 'u8[2048]{0}', space=vmem, size = 0x800, scoped, tag = 'output window, operand 0, single buffered']
    %22 = vsyncpa [#allocation3], 0
    %23 = vsyncpa [#allocation6], 0
    %24 = vsyncpa [#allocation9], 0
    %25 = vsyncpa [#allocation12], 0
    %26 = vsyncpa [#allocation15], 0
    %27 = vsyncpa [#allocation18], 0
    %28 = vsyncpa [#allocation21], 0
    %29 = vsyncpa [#allocation24], 0
    %30 = vsyncpa [#allocation4], 0
    // Predicated region
    $region2: #{tpu_custom_call.1} parent=1 // pred_check
      _
    $region3: #{tpu_custom_call.1} parent=1 // pred_check_branch
      %32 = sbr.rel (0) target = $region5
    $region4: #{tpu_custom_call.1} parent=1 // pred_region
      %s34 = ssub.s32 64, 64
      %35 = vsyncadd [#allocation3], %s34
      %s37 = sshll.u32 [#allocation2], 4
      %s38 = int_to_ptr.vmem [resolvable:$true] %s37
      %40 = dma.hbm_to_vmem [thread:$0]  %s0, 64, %s38, [#allocation3]
    $region5: #{tpu_custom_call.1} parent=1 // pred_fallthru
      _
    // Predicated region
    $region6: #{tpu_custom_call.1} parent=1 // pred_check
      _
    $region7: #{tpu_custom_call.1} parent=1 // pred_check_branch
      %42 = sbr.rel (0) target = $region9
    $region8: #{tpu_custom_call.1} parent=1 // pred_region
      %s44 = ssub.s32 64, 64
      %45 = vsyncadd [#allocation6], %s44
      %s47 = sshll.u32 [#allocation5], 4
      %s48 = int_to_ptr.vmem [resolvable:$true] %s47
      %50 = dma.hbm_to_vmem [thread:$0]  %s1, 64, %s48, [#allocation6]
    $region9: #{tpu_custom_call.1} parent=1 // pred_fallthru
      _
    // Predicated region
    $region10: #{tpu_custom_call.1} parent=1 // pred_check
      _
    $region11: #{tpu_custom_call.1} parent=1 // pred_check_branch
      %52 = sbr.rel (0) target = $region13
    $region12: #{tpu_custom_call.1} parent=1 // pred_region
      %s54 = ssub.s32 1024, 1024
      %55 = vsyncadd [#allocation6], %s54
      %s56 = sshll.u32 [#allocation7], 4
      %s57 = int_to_ptr.vmem [resolvable:$true] %s56
      %62 = dma.hbm_to_vmem [thread:$0]  %s2, 1024, %s57, [#allocation6], 128, 128, 8
    $region13: #{tpu_custom_call.1} parent=1 // pred_fallthru
      _
    // Predicated region
    $region14: #{tpu_custom_call.1} parent=1 // pred_check
      _
    $region15: #{tpu_custom_call.1} parent=1 // pred_check_branch
      %64 = sbr.rel (0) target = $region17
    $region16: #{tpu_custom_call.1} parent=1 // pred_region
      %s66 = ssub.s32 16, 16
      %67 = vsyncadd [#allocation9], %s66
      %s69 = sshll.u32 [#allocation8], 4
      %s70 = int_to_ptr.vmem [resolvable:$true] %s69
      %72 = dma.hbm_to_vmem [thread:$0]  %s3, 16, %s70, [#allocation9]
    $region17: #{tpu_custom_call.1} parent=1 // pred_fallthru
      _
    // Predicated region
    $region18: #{tpu_custom_call.1} parent=1 // pred_check
      _
    $region19: #{tpu_custom_call.1} parent=1 // pred_check_branch
      %74 = sbr.rel (0) target = $region21
    $region20: #{tpu_custom_call.1} parent=1 // pred_region
      %s76 = ssub.s32 128, 128
      %77 = vsyncadd [#allocation9], %s76
      %s79 = sshll.u32 [#allocation10], 4
      %s80 = int_to_ptr.vmem [resolvable:$true] %s79
      %82 = dma.hbm_to_vmem [thread:$0]  %s4, 128, %s80, [#allocation9]
    $region21: #{tpu_custom_call.1} parent=1 // pred_fallthru
      _
    // Predicated region
    $region22: #{tpu_custom_call.1} parent=1 // pred_check
      _
    $region23: #{tpu_custom_call.1} parent=1 // pred_check_branch
      %84 = sbr.rel (0) target = $region25
    $region24: #{tpu_custom_call.1} parent=1 // pred_region
      %s86 = ssub.s32 256, 256
      %87 = vsyncadd [#allocation12], %s86
      %s88 = sshll.u32 [#allocation11], 4
      %s89 = int_to_ptr.vmem [resolvable:$true] %s88
      %94 = dma.hbm_to_vmem [thread:$0]  %s5, 256, %s89, [#allocation12], 128, 128, 8
    $region25: #{tpu_custom_call.1} parent=1 // pred_fallthru
      _
    // Predicated region
    $region26: #{tpu_custom_call.1} parent=1 // pred_check
      _
    $region27: #{tpu_custom_call.1} parent=1 // pred_check_branch
      %96 = sbr.rel (0) target = $region29
    $region28: #{tpu_custom_call.1} parent=1 // pred_region
      %s98 = ssub.s32 256, 256
      %99 = vsyncadd [#allocation12], %s98
      %s100 = sshll.u32 [#allocation13], 4
      %s101 = int_to_ptr.vmem [resolvable:$true] %s100
      %106 = dma.hbm_to_vmem [thread:$0]  %s6, 256, %s101, [#allocation12], 128, 128, 8
    $region29: #{tpu_custom_call.1} parent=1 // pred_fallthru
      _
    // Predicated region
    $region30: #{tpu_custom_call.1} parent=1 // pred_check
      _
    $region31: #{tpu_custom_call.1} parent=1 // pred_check_branch
      %108 = sbr.rel (0) target = $region33
    $region32: #{tpu_custom_call.1} parent=1 // pred_region
      %s110 = ssub.s32 256, 256
      %111 = vsyncadd [#allocation15], %s110
      %s112 = sshll.u32 [#allocation14], 4
      %s113 = int_to_ptr.vmem [resolvable:$true] %s112
      %118 = dma.hbm_to_vmem [thread:$0]  %s7, 256, %s113, [#allocation15], 128, 128, 8
    $region33: #{tpu_custom_call.1} parent=1 // pred_fallthru
      _
    // Predicated region
    $region34: #{tpu_custom_call.1} parent=1 // pred_check
      _
    $region35: #{tpu_custom_call.1} parent=1 // pred_check_branch
      %120 = sbr.rel (0) target = $region37
    $region36: #{tpu_custom_call.1} parent=1 // pred_region
      %s122 = ssub.s32 256, 256
      %123 = vsyncadd [#allocation15], %s122
      %s124 = sshll.u32 [#allocation16], 4
      %s125 = int_to_ptr.vmem [resolvable:$true] %s124
      %130 = dma.hbm_to_vmem [thread:$0]  %s8, 256, %s125, [#allocation15], 128, 128, 8
    $region37: #{tpu_custom_call.1} parent=1 // pred_fallthru
      _
    // Predicated region
    $region38: #{tpu_custom_call.1} parent=1 // pred_check
      _
    $region39: #{tpu_custom_call.1} parent=1 // pred_check_branch
      %132 = sbr.rel (0) target = $region41
    $region40: #{tpu_custom_call.1} parent=1 // pred_region
      _
    $region41: #{tpu_custom_call.1} parent=1 // pred_fallthru
      _
    // Predicated region
    $region42: #{tpu_custom_call.1} parent=1 // pred_check
      _
    $region43: #{tpu_custom_call.1} parent=1 // pred_check_branch
      %134 = sbr.rel (0) target = $region45
    $region44: #{tpu_custom_call.1} parent=1 // pred_region
      %s136 = ssub.s32 256, 256
      %137 = vsyncadd [#allocation18], %s136
      %s138 = sshll.u32 [#allocation17], 4
      %s139 = int_to_ptr.vmem [resolvable:$true] %s138
      %144 = dma.hbm_to_vmem [thread:$0]  %s10, 256, %s139, [#allocation18], 128, 128, 8
    $region45: #{tpu_custom_call.1} parent=1 // pred_fallthru
      _
    // Predicated region
    $region46: #{tpu_custom_call.1} parent=1 // pred_check
      _
    $region47: #{tpu_custom_call.1} parent=1 // pred_check_branch
      %146 = sbr.rel (0) target = $region49
    $region48: #{tpu_custom_call.1} parent=1 // pred_region
      %s148 = ssub.s32 256, 256
      %149 = vsyncadd [#allocation18], %s148
      %s150 = sshll.u32 [#allocation19], 4
      %s151 = int_to_ptr.vmem [resolvable:$true] %s150
      %156 = dma.hbm_to_vmem [thread:$0]  %s11, 256, %s151, [#allocation18], 128, 128, 8
    $region49: #{tpu_custom_call.1} parent=1 // pred_fallthru
      _
    // Predicated region
    $region50: #{tpu_custom_call.1} parent=1 // pred_check
      _
    $region51: #{tpu_custom_call.1} parent=1 // pred_check_branch
      %158 = sbr.rel (0) target = $region53
    $region52: #{tpu_custom_call.1} parent=1 // pred_region
      %s160 = ssub.s32 256, 256
      %161 = vsyncadd [#allocation21], %s160
      %s162 = sshll.u32 [#allocation20], 4
      %s163 = int_to_ptr.vmem [resolvable:$true] %s162
      %168 = dma.hbm_to_vmem [thread:$0]  %s12, 256, %s163, [#allocation21], 128, 128, 8
    $region53: #{tpu_custom_call.1} parent=1 // pred_fallthru
      _
    // Predicated region
    $region54: #{tpu_custom_call.1} parent=1 // pred_check
      _
    $region55: #{tpu_custom_call.1} parent=1 // pred_check_branch
      %170 = sbr.rel (0) target = $region57
    $region56: #{tpu_custom_call.1} parent=1 // pred_region
      _
    $region57: #{tpu_custom_call.1} parent=1 // pred_fallthru
      _
    // Predicated region
    $region58: #{tpu_custom_call.1} parent=1 // pred_check
      _
    $region59: #{tpu_custom_call.1} parent=1 // pred_check_branch
      %172 = sbr.rel (0) target = $region61
    $region60: #{tpu_custom_call.1} parent=1 // pred_region
      %s174 = ssub.s32 2048, 2048
      %175 = vsyncadd [#allocation21], %s174
      %s176 = sshll.u32 [#allocation22], 4
      %s177 = int_to_ptr.vmem [resolvable:$true] %s176
      %182 = dma.hbm_to_vmem [thread:$0]  %s14, 2048, %s177, [#allocation21], 128, 128, 8
    $region61: #{tpu_custom_call.1} parent=1 // pred_fallthru
      _
    // Predicated region
    $region62: #{tpu_custom_call.1} parent=1 // pred_check
      _
    $region63: #{tpu_custom_call.1} parent=1 // pred_check_branch
      %184 = sbr.rel (0) target = $region65
    $region64: #{tpu_custom_call.1} parent=1 // pred_region
      %s186 = ssub.s32 2048, 2048
      %187 = vsyncadd [#allocation24], %s186
      %s188 = sshll.u32 [#allocation23], 4
      %s189 = int_to_ptr.vmem [resolvable:$true] %s188
      %194 = dma.hbm_to_vmem [thread:$0]  %s15, 2048, %s189, [#allocation24], 128, 128, 8
    $region65: #{tpu_custom_call.1} parent=1 // pred_fallthru
      _
    // Predicated region
    $region66: #{tpu_custom_call.1} parent=1 // pred_check
      _
    $region67: #{tpu_custom_call.1} parent=1 // pred_check_branch
      %196 = sbr.rel (0) target = $region69
    $region68: #{tpu_custom_call.1} parent=1 // pred_region
      _
    $region69: #{tpu_custom_call.1} parent=1 // pred_fallthru
      _
    // Predicated region
    $region70: #{tpu_custom_call.1} parent=1 // pred_check
      _
    $region71: #{tpu_custom_call.1} parent=1 // pred_check_branch
      %198 = sbr.rel (0) target = $region73
    $region72: #{tpu_custom_call.1} parent=1 // pred_region
      %199 = dma.done [#allocation3], 64
    $region73: #{tpu_custom_call.1} parent=1 // pred_fallthru
      _
    // Predicated region
    $region74: #{tpu_custom_call.1} parent=1 // pred_check
      _
    $region75: #{tpu_custom_call.1} parent=1 // pred_check_branch
      %201 = sbr.rel (0) target = $region77
    $region76: #{tpu_custom_call.1} parent=1 // pred_region
      %202 = dma.done [#allocation6], 64
    $region77: #{tpu_custom_call.1} parent=1 // pred_fallthru
      _
    // Predicated region
    $region78: #{tpu_custom_call.1} parent=1 // pred_check
      _
    $region79: #{tpu_custom_call.1} parent=1 // pred_check_branch
      %204 = sbr.rel (0) target = $region81
    $region80: #{tpu_custom_call.1} parent=1 // pred_region
      %205 = dma.done [#allocation6], 1024
    $region81: #{tpu_custom_call.1} parent=1 // pred_fallthru
      _
    // Predicated region
    $region82: #{tpu_custom_call.1} parent=1 // pred_check
      _
    $region83: #{tpu_custom_call.1} parent=1 // pred_check_branch
      %207 = sbr.rel (0) target = $region85
    $region84: #{tpu_custom_call.1} parent=1 // pred_region
      %208 = dma.done [#allocation9], 16
    $region85: #{tpu_custom_call.1} parent=1 // pred_fallthru
      _
    // Predicated region
    $region86: #{tpu_custom_call.1} parent=1 // pred_check
      _
    $region87: #{tpu_custom_call.1} parent=1 // pred_check_branch
      %210 = sbr.rel (0) target = $region89
    $region88: #{tpu_custom_call.1} parent=1 // pred_region
      %211 = dma.done [#allocation9], 128
    $region89: #{tpu_custom_call.1} parent=1 // pred_fallthru
      _
    // Predicated region
    $region90: #{tpu_custom_call.1} parent=1 // pred_check
      _
    $region91: #{tpu_custom_call.1} parent=1 // pred_check_branch
      %213 = sbr.rel (0) target = $region93
    $region92: #{tpu_custom_call.1} parent=1 // pred_region
      %214 = dma.done [#allocation12], 256
    $region93: #{tpu_custom_call.1} parent=1 // pred_fallthru
      _
    // Predicated region
    $region94: #{tpu_custom_call.1} parent=1 // pred_check
      _
    $region95: #{tpu_custom_call.1} parent=1 // pred_check_branch
      %216 = sbr.rel (0) target = $region97
    $region96: #{tpu_custom_call.1} parent=1 // pred_region
      %217 = dma.done [#allocation12], 256
    $region97: #{tpu_custom_call.1} parent=1 // pred_fallthru
      _
    // Predicated region
    $region98: #{tpu_custom_call.1} parent=1 // pred_check
      _
    $region99: #{tpu_custom_call.1} parent=1 // pred_check_branch
      %219 = sbr.rel (0) target = $region101
    $region100: #{tpu_custom_call.1} parent=1 // pred_region
      %220 = dma.done [#allocation15], 256
    $region101: #{tpu_custom_call.1} parent=1 // pred_fallthru
      _
    // Predicated region
    $region102: #{tpu_custom_call.1} parent=1 // pred_check
      _
    $region103: #{tpu_custom_call.1} parent=1 // pred_check_branch
      %222 = sbr.rel (0) target = $region105
    $region104: #{tpu_custom_call.1} parent=1 // pred_region
      %223 = dma.done [#allocation15], 256
    $region105: #{tpu_custom_call.1} parent=1 // pred_fallthru
      _
    // Predicated region
    $region106: #{tpu_custom_call.1} parent=1 // pred_check
      _
    $region107: #{tpu_custom_call.1} parent=1 // pred_check_branch
      %225 = sbr.rel (0) target = $region109
    $region108: #{tpu_custom_call.1} parent=1 // pred_region
      %226 = dma.done [#allocation18], 256
    $region109: #{tpu_custom_call.1} parent=1 // pred_fallthru
      _
    // Predicated region
    $region110: #{tpu_custom_call.1} parent=1 // pred_check
      _
    $region111: #{tpu_custom_call.1} parent=1 // pred_check_branch
      %228 = sbr.rel (0) target = $region113
    $region112: #{tpu_custom_call.1} parent=1 // pred_region
      %229 = dma.done [#allocation18], 256
    $region113: #{tpu_custom_call.1} parent=1 // pred_fallthru
      _
    // Predicated region
    $region114: #{tpu_custom_call.1} parent=1 // pred_check
      _
    $region115: #{tpu_custom_call.1} parent=1 // pred_check_branch
      %231 = sbr.rel (0) target = $region117
    $region116: #{tpu_custom_call.1} parent=1 // pred_region
      %232 = dma.done [#allocation21], 256
    $region117: #{tpu_custom_call.1} parent=1 // pred_fallthru
      _
    // Predicated region
    $region118: #{tpu_custom_call.1} parent=1 // pred_check
      _
    $region119: #{tpu_custom_call.1} parent=1 // pred_check_branch
      %234 = sbr.rel (0) target = $region121
    $region120: #{tpu_custom_call.1} parent=1 // pred_region
      %235 = dma.done [#allocation21], 2048
    $region121: #{tpu_custom_call.1} parent=1 // pred_fallthru
      _
    // Predicated region
    $region122: #{tpu_custom_call.1} parent=1 // pred_check
      _
    $region123: #{tpu_custom_call.1} parent=1 // pred_check_branch
      %237 = sbr.rel (0) target = $region125
    $region124: #{tpu_custom_call.1} parent=1 // pred_region
      %238 = dma.done [#allocation24], 2048
    $region125: #{tpu_custom_call.1} parent=1 // pred_fallthru
      _
    %v239 = vld [vmem:[#allocation2] sm:$0xf]
    %v240 = vld [vmem:[#allocation7] sm:$0xff]
    %v241 = vld [vmem:[#allocation7 + $0x8] sm:$0xff]
    %v242 = vld [vmem:[#allocation7 + $0x10] sm:$0xff]
    %v243 = vld [vmem:[#allocation7 + $0x18] sm:$0xff]
    %v244 = vld [vmem:[#allocation7 + $0x20] sm:$0xff]
    %v245 = vld [vmem:[#allocation7 + $0x28] sm:$0xff]
    %v246 = vld [vmem:[#allocation7 + $0x30] sm:$0xff]
    %v247 = vld [vmem:[#allocation7 + $0x38] sm:$0xff]
    %v248 = vld [vmem:[#allocation8] sm:$0x1]
    %v250 = vlaneseq
    %v251 = vshrl.u32 %v250, 7
    %v252 = vsub.s32 0, %v251
    %v253 = vrot.slane %v248, %v252
    %vm255 = vcmask 523264
    %v257 = vsel %vm255, %v239, 0
    %259 = vmatprep.subr.mxu0 0.0
    %260 = vmatpush1.msra.mxu0 0.0
    %261 = vmatprep.subr.mxu0 0.0
    %262 = vmatpush1.msra.mxu0 0.0
    %263 = vmatprep.subr.mxu0 0.0
    %264 = vmatpush1.msra.mxu0 0.0
    %265 = vmatprep.subr.mxu0 0.0
    %266 = vmatpush1.msra.mxu0 0.0
    %267 = vmatprep.subr.mxu0 0.0
    %268 = vmatpush1.msra.mxu0 0.0
    %269 = vmatprep.subr.mxu0 0.0
    %270 = vmatpush1.msra.mxu0 0.0
    %271 = vmatprep.subr.mxu0 0.0
    %272 = vmatpush1.msra.mxu0 0.0
    %273 = vmatprep.subr.mxu0 0.0
    %274 = vmatpush1.msra.mxu0 0.0
    %275 = vmatprep.subr.mxu0 0.0
    %v276 = vand.u32 %v247, 4294901760
    %277 = vmatpush1.msra.mxu0 %v276
    %278 = vmatprep.subr.mxu0 0.0
    %v279 = vand.u32 %v246, 4294901760
    %280 = vmatpush1.msra.mxu0 %v279
    %281 = vmatprep.subr.mxu0 0.0
    %v282 = vand.u32 %v245, 4294901760
    %283 = vmatpush1.msra.mxu0 %v282
    %284 = vmatprep.subr.mxu0 0.0
    %v285 = vand.u32 %v244, 4294901760
    %286 = vmatpush1.msra.mxu0 %v285
    %287 = vmatprep.subr.mxu0 0.0
    %v288 = vand.u32 %v243, 4294901760
    %289 = vmatpush1.msra.mxu0 %v288
    %290 = vmatprep.subr.mxu0 0.0
    %v291 = vand.u32 %v242, 4294901760
    %292 = vmatpush1.msra.mxu0 %v291
    %293 = vmatprep.subr.mxu0 0.0
    %v294 = vand.u32 %v241, 4294901760
    %295 = vmatpush1.msra.mxu0 %v294
    %296 = vmatprep.subr.mxu0 0.0
    %v297 = vand.u32 %v240, 4294901760
    %298 = vmatpush1.msra.mxu0 %v297
    %299 = vmatprep.subr.mxu0 0.0
    %300 = vmatpush2.msra.mxu0 0.0
    %301 = vmatprep.subr.mxu0 0.0
    %302 = vmatpush2.msra.mxu0 0.0
    %303 = vmatprep.subr.mxu0 0.0
    %304 = vmatpush2.msra.mxu0 0.0
    %305 = vmatprep.subr.mxu0 0.0
    %306 = vmatpush2.msra.mxu0 0.0
    %307 = vmatprep.subr.mxu0 0.0
    %308 = vmatpush2.msra.mxu0 0.0
    %309 = vmatprep.subr.mxu0 0.0
    %310 = vmatpush2.msra.mxu0 0.0
    %311 = vmatprep.subr.mxu0 0.0
    %312 = vmatpush2.msra.mxu0 0.0
    %313 = vmatprep.subr.mxu0 0.0
    %314 = vmatpush2.msra.mxu0 0.0
    %315 = vmatprep.subr.mxu0 0.0
    %316 = vmatpush2.msra.mxu0 0.0
    %317 = vmatprep.subr.mxu0 0.0
    %318 = vmatpush2.msra.mxu0 0.0
    %319 = vmatprep.subr.mxu0 0.0
    %320 = vmatpush2.msra.mxu0 0.0
    %321 = vmatprep.subr.mxu0 0.0
    %322 = vmatpush2.msra.mxu0 0.0
    %323 = vmatprep.subr.mxu0 0.0
    %324 = vmatpush2.msra.mxu0 0.0
    %325 = vmatprep.subr.mxu0 0.0
    %326 = vmatpush2.msra.mxu0 0.0
    %327 = vmatprep.subr.mxu0 0.0
    %328 = vmatpush2.msra.mxu0 0.0
    %329 = vmatprep.subr.mxu0 0.0
    %330 = vmatpush2.msra.mxu0 0.0
    %331 = vmatprep.mubr.f32.mxu0 0.0
    %v332 = vand.u32 %v257, 4294901760
    %v333 = vsub.f32 %v257, %v332
    %v334 = vand.u32 %v333, 4294901760
    %v335 = vsub.f32 %v333, %v334
    %v336 = vand.u32 %v335, 4294901760
    %337 = vmatmul.mubr.f32.gmra.mxu0 %v336
    %v338 = vpop.f32.mrf.mxu0
    %v339 = vadd.f32 %v253, %v338
    %v340 = vpop.f32.mrf.mxu0
    %341 = vdwg.mxu0
    %342 = vmatprep.subr.mxu0 0.0
    %343 = vmatpush1.msra.mxu0 0.0
    %344 = vmatprep.subr.mxu0 0.0
    %345 = vmatpush1.msra.mxu0 0.0
    %346 = vmatprep.subr.mxu0 0.0
    %347 = vmatpush1.msra.mxu0 0.0
    %348 = vmatprep.subr.mxu0 0.0
    %349 = vmatpush1.msra.mxu0 0.0
    %350 = vmatprep.subr.mxu0 0.0
    %351 = vmatpush1.msra.mxu0 0.0
    %352 = vmatprep.subr.mxu0 0.0
    %353 = vmatpush1.msra.mxu0 0.0
    %354 = vmatprep.subr.mxu0 0.0
    %355 = vmatpush1.msra.mxu0 0.0
    %356 = vmatprep.subr.mxu0 0.0
    %357 = vmatpush1.msra.mxu0 0.0
    %358 = vmatprep.subr.mxu0 0.0
    %v359 = vand.u32 %v247, 4294901760
    %v360 = vsub.f32 %v247, %v359
    %v361 = vand.u32 %v360, 4294901760
    %v362 = vsub.f32 %v360, %v361
    %v363 = vand.u32 %v362, 4294901760
    %364 = vmatpush1.msra.mxu0 %v363
    %365 = vmatprep.subr.mxu0 0.0
    %v366 = vand.u32 %v246, 4294901760
    %v367 = vsub.f32 %v246, %v366
    %v368 = vand.u32 %v367, 4294901760
    %v369 = vsub.f32 %v367, %v368
    %v370 = vand.u32 %v369, 4294901760
    %371 = vmatpush1.msra.mxu0 %v370
    %372 = vmatprep.subr.mxu0 0.0
    %v373 = vand.u32 %v245, 4294901760
    %v374 = vsub.f32 %v245, %v373
    %v375 = vand.u32 %v374, 4294901760
    %v376 = vsub.f32 %v374, %v375
    %v377 = vand.u32 %v376, 4294901760
    %378 = vmatpush1.msra.mxu0 %v377
    %379 = vmatprep.subr.mxu0 0.0
    %v380 = vand.u32 %v244, 4294901760
    %v381 = vsub.f32 %v244, %v380
    %v382 = vand.u32 %v381, 4294901760
    %v383 = vsub.f32 %v381, %v382
    %v384 = vand.u32 %v383, 4294901760
    %385 = vmatpush1.msra.mxu0 %v384
    %386 = vmatprep.subr.mxu0 0.0
    %v387 = vand.u32 %v243, 4294901760
    %v388 = vsub.f32 %v243, %v387
    %v389 = vand.u32 %v388, 4294901760
    %v390 = vsub.f32 %v388, %v389
    %v391 = vand.u32 %v390, 4294901760
    %392 = vmatpush1.msra.mxu0 %v391
    %393 = vmatprep.subr.mxu0 0.0
    %v394 = vand.u32 %v242, 4294901760
    %v395 = vsub.f32 %v242, %v394
    %v396 = vand.u32 %v395, 4294901760
    %v397 = vsub.f32 %v395, %v396
    %v398 = vand.u32 %v397, 4294901760
    %399 = vmatpush1.msra.mxu0 %v398
    %400 = vmatprep.subr.mxu0 0.0
    %v401 = vand.u32 %v241, 4294901760
    %v402 = vsub.f32 %v241, %v401
    %v403 = vand.u32 %v402, 4294901760
    %v404 = vsub.f32 %v402, %v403
    %v405 = vand.u32 %v404, 4294901760
    %406 = vmatpush1.msra.mxu0 %v405
    %407 = vmatprep.subr.mxu0 0.0
    %v408 = vand.u32 %v240, 4294901760
    %v409 = vsub.f32 %v240, %v408
    %v410 = vand.u32 %v409, 4294901760
    %v411 = vsub.f32 %v409, %v410
    %v412 = vand.u32 %v411, 4294901760
    %413 = vmatpush1.msra.mxu0 %v412
    %414 = vmatprep.subr.mxu0 0.0
    %415 = vmatpush2.msra.mxu0 0.0
    %416 = vmatprep.subr.mxu0 0.0
    %417 = vmatpush2.msra.mxu0 0.0
    %418 = vmatprep.subr.mxu0 0.0
    %419 = vmatpush2.msra.mxu0 0.0
    %420 = vmatprep.subr.mxu0 0.0
    %421 = vmatpush2.msra.mxu0 0.0
    %422 = vmatprep.subr.mxu0 0.0
    %423 = vmatpush2.msra.mxu0 0.0
    %424 = vmatprep.subr.mxu0 0.0
    %425 = vmatpush2.msra.mxu0 0.0
    %426 = vmatprep.subr.mxu0 0.0
    %427 = vmatpush2.msra.mxu0 0.0
    %428 = vmatprep.subr.mxu0 0.0
    %429 = vmatpush2.msra.mxu0 0.0
    %430 = vmatprep.subr.mxu0 0.0
    %431 = vmatpush2.msra.mxu0 0.0
    %432 = vmatprep.subr.mxu0 0.0
    %433 = vmatpush2.msra.mxu0 0.0
    %434 = vmatprep.subr.mxu0 0.0
    %435 = vmatpush2.msra.mxu0 0.0
    %436 = vmatprep.subr.mxu0 0.0
    %437 = vmatpush2.msra.mxu0 0.0
    %438 = vmatprep.subr.mxu0 0.0
    %439 = vmatpush2.msra.mxu0 0.0
    %440 = vmatprep.subr.mxu0 0.0
    %441 = vmatpush2.msra.mxu0 0.0
    %442 = vmatprep.subr.mxu0 0.0
    %443 = vmatpush2.msra.mxu0 0.0
    %444 = vmatprep.subr.mxu0 0.0
    %445 = vmatpush2.msra.mxu0 0.0
    %446 = vmatprep.mubr.f32.mxu0 0.0
    %v447 = vand.u32 %v257, 4294901760
    %448 = vmatmul.mubr.f32.gmra.mxu0 %v447
    %v449 = vpop.f32.mrf.mxu0
    %v450 = vadd.f32 %v339, %v449
    %v451 = vpop.f32.mrf.mxu0
    %452 = vdwg.mxu0
    %453 = vmatprep.subr.mxu0 0.0
    %454 = vmatpush1.msra.mxu0 0.0
    %455 = vmatprep.subr.mxu0 0.0
    %456 = vmatpush1.msra.mxu0 0.0
    %457 = vmatprep.subr.mxu0 0.0
    %458 = vmatpush1.msra.mxu0 0.0
    %459 = vmatprep.subr.mxu0 0.0
    %460 = vmatpush1.msra.mxu0 0.0
    %461 = vmatprep.subr.mxu0 0.0
    %462 = vmatpush1.msra.mxu0 0.0
    %463 = vmatprep.subr.mxu0 0.0
    %464 = vmatpush1.msra.mxu0 0.0
    %465 = vmatprep.subr.mxu0 0.0
    %466 = vmatpush1.msra.mxu0 0.0
    %467 = vmatprep.subr.mxu0 0.0
    %468 = vmatpush1.msra.mxu0 0.0
    %469 = vmatprep.subr.mxu0 0.0
    %v470 = vand.u32 %v247, 4294901760
    %v471 = vsub.f32 %v247, %v470
    %472 = vmatpush1.msra.mxu0 %v471
    %473 = vmatprep.subr.mxu0 0.0
    %v474 = vand.u32 %v246, 4294901760
    %v475 = vsub.f32 %v246, %v474
    %476 = vmatpush1.msra.mxu0 %v475
    %477 = vmatprep.subr.mxu0 0.0
    %v478 = vand.u32 %v245, 4294901760
    %v479 = vsub.f32 %v245, %v478
    %480 = vmatpush1.msra.mxu0 %v479
    %481 = vmatprep.subr.mxu0 0.0
    %v482 = vand.u32 %v244, 4294901760
    %v483 = vsub.f32 %v244, %v482
    %484 = vmatpush1.msra.mxu0 %v483
    %485 = vmatprep.subr.mxu0 0.0
    %v486 = vand.u32 %v243, 4294901760
    %v487 = vsub.f32 %v243, %v486
    %488 = vmatpush1.msra.mxu0 %v487
    %489 = vmatprep.subr.mxu0 0.0
    %v490 = vand.u32 %v242, 4294901760
    %v491 = vsub.f32 %v242, %v490
    %492 = vmatpush1.msra.mxu0 %v491
    %493 = vmatprep.subr.mxu0 0.0
    %v494 = vand.u32 %v241, 4294901760
    %v495 = vsub.f32 %v241, %v494
    %496 = vmatpush1.msra.mxu0 %v495
    %497 = vmatprep.subr.mxu0 0.0
    %v498 = vand.u32 %v240, 4294901760
    %v499 = vsub.f32 %v240, %v498
    %500 = vmatpush1.msra.mxu0 %v499
    %501 = vmatprep.subr.mxu0 0.0
    %502 = vmatpush2.msra.mxu0 0.0
    %503 = vmatprep.subr.mxu0 0.0
    %504 = vmatpush2.msra.mxu0 0.0
    %505 = vmatprep.subr.mxu0 0.0
    %506 = vmatpush2.msra.mxu0 0.0
    %507 = vmatprep.subr.mxu0 0.0
    %508 = vmatpush2.msra.mxu0 0.0
    %509 = vmatprep.subr.mxu0 0.0
    %510 = vmatpush2.msra.mxu0 0.0
    %511 = vmatprep.subr.mxu0 0.0
    %512 = vmatpush2.msra.mxu0 0.0
    %513 = vmatprep.subr.mxu0 0.0
    %514 = vmatpush2.msra.mxu0 0.0
    %515 = vmatprep.subr.mxu0 0.0
    %516 = vmatpush2.msra.mxu0 0.0
    %517 = vmatprep.subr.mxu0 0.0
    %518 = vmatpush2.msra.mxu0 0.0
    %519 = vmatprep.subr.mxu0 0.0
    %520 = vmatpush2.msra.mxu0 0.0
    %521 = vmatprep.subr.mxu0 0.0
    %522 = vmatpush2.msra.mxu0 0.0
    %523 = vmatprep.subr.mxu0 0.0
    %524 = vmatpush2.msra.mxu0 0.0
    %525 = vmatprep.subr.mxu0 0.0
    %526 = vmatpush2.msra.mxu0 0.0
    %527 = vmatprep.subr.mxu0 0.0
    %528 = vmatpush2.msra.mxu0 0.0
    %529 = vmatprep.subr.mxu0 0.0
    %530 = vmatpush2.msra.mxu0 0.0
    %531 = vmatprep.subr.mxu0 0.0
    %532 = vmatpush2.msra.mxu0 0.0
    %533 = vmatprep.mubr.f32.mxu0 0.0
    %v534 = vand.u32 %v257, 4294901760
    %v535 = vsub.f32 %v257, %v534
    %536 = vmatmul.mubr.f32.gmra.mxu0 %v535
    %v537 = vpop.f32.mrf.mxu0
    %v538 = vadd.f32 %v450, %v537
    %v539 = vpop.f32.mrf.mxu0
    %540 = vdwg.mxu0
    %541 = vmatprep.subr.mxu0 0.0
    %542 = vmatpush1.msra.mxu0 0.0
    %543 = vmatprep.subr.mxu0 0.0
    %544 = vmatpush1.msra.mxu0 0.0
    %545 = vmatprep.subr.mxu0 0.0
    %546 = vmatpush1.msra.mxu0 0.0
    %547 = vmatprep.subr.mxu0 0.0
    %548 = vmatpush1.msra.mxu0 0.0
    %549 = vmatprep.subr.mxu0 0.0
    %550 = vmatpush1.msra.mxu0 0.0
    %551 = vmatprep.subr.mxu0 0.0
    %552 = vmatpush1.msra.mxu0 0.0
    %553 = vmatprep.subr.mxu0 0.0
    %554 = vmatpush1.msra.mxu0 0.0
    %555 = vmatprep.subr.mxu0 0.0
    %556 = vmatpush1.msra.mxu0 0.0
    %557 = vmatprep.subr.mxu0 0.0
    %v558 = vand.u32 %v247, 4294901760
    %559 = vmatpush1.msra.mxu0 %v558
    %560 = vmatprep.subr.mxu0 0.0
    %v561 = vand.u32 %v246, 4294901760
    %562 = vmatpush1.msra.mxu0 %v561
    %563 = vmatprep.subr.mxu0 0.0
    %v564 = vand.u32 %v245, 4294901760
    %565 = vmatpush1.msra.mxu0 %v564
    %566 = vmatprep.subr.mxu0 0.0
    %v567 = vand.u32 %v244, 4294901760
    %568 = vmatpush1.msra.mxu0 %v567
    %569 = vmatprep.subr.mxu0 0.0
    %v570 = vand.u32 %v243, 4294901760
    %571 = vmatpush1.msra.mxu0 %v570
    %572 = vmatprep.subr.mxu0 0.0
    %v573 = vand.u32 %v242, 4294901760
    %574 = vmatpush1.msra.mxu0 %v573
    %575 = vmatprep.subr.mxu0 0.0
    %v576 = vand.u32 %v241, 4294901760
    %577 = vmatpush1.msra.mxu0 %v576
    %578 = vmatprep.subr.mxu0 0.0
    %v579 = vand.u32 %v240, 4294901760
    %580 = vmatpush1.msra.mxu0 %v579
    %581 = vmatprep.subr.mxu0 0.0
    %582 = vmatpush2.msra.mxu0 0.0
    %583 = vmatprep.subr.mxu0 0.0
    %584 = vmatpush2.msra.mxu0 0.0
    %585 = vmatprep.subr.mxu0 0.0
    %586 = vmatpush2.msra.mxu0 0.0
    %587 = vmatprep.subr.mxu0 0.0
    %588 = vmatpush2.msra.mxu0 0.0
    %589 = vmatprep.subr.mxu0 0.0
    %590 = vmatpush2.msra.mxu0 0.0
    %591 = vmatprep.subr.mxu0 0.0
    %592 = vmatpush2.msra.mxu0 0.0
    %593 = vmatprep.subr.mxu0 0.0
    %594 = vmatpush2.msra.mxu0 0.0
    %595 = vmatprep.subr.mxu0 0.0
    %596 = vmatpush2.msra.mxu0 0.0
    %597 = vmatprep.subr.mxu0 0.0
    %598 = vmatpush2.msra.mxu0 0.0
    %599 = vmatprep.subr.mxu0 0.0
    %600 = vmatpush2.msra.mxu0 0.0
    %601 = vmatprep.subr.mxu0 0.0
    %602 = vmatpush2.msra.mxu0 0.0
    %603 = vmatprep.subr.mxu0 0.0
    %604 = vmatpush2.msra.mxu0 0.0
    %605 = vmatprep.subr.mxu0 0.0
    %606 = vmatpush2.msra.mxu0 0.0
    %607 = vmatprep.subr.mxu0 0.0
    %608 = vmatpush2.msra.mxu0 0.0
    %609 = vmatprep.subr.mxu0 0.0
    %610 = vmatpush2.msra.mxu0 0.0
    %611 = vmatprep.subr.mxu0 0.0
    %612 = vmatpush2.msra.mxu0 0.0
    %613 = vmatprep.mubr.f32.mxu0 0.0
    %v614 = vand.u32 %v257, 4294901760
    %v615 = vsub.f32 %v257, %v614
    %v616 = vand.u32 %v615, 4294901760
    %617 = vmatmul.mubr.f32.gmra.mxu0 %v616
    %v618 = vpop.f32.mrf.mxu0
    %v619 = vadd.f32 %v538, %v618
    %v620 = vpop.f32.mrf.mxu0
    %621 = vdwg.mxu0
    %622 = vmatprep.subr.mxu0 0.0
    %623 = vmatpush1.msra.mxu0 0.0
    %624 = vmatprep.subr.mxu0 0.0
    %625 = vmatpush1.msra.mxu0 0.0
    %626 = vmatprep.subr.mxu0 0.0
    %627 = vmatpush1.msra.mxu0 0.0
    %628 = vmatprep.subr.mxu0 0.0
    %629 = vmatpush1.msra.mxu0 0.0
    %630 = vmatprep.subr.mxu0 0.0
    %631 = vmatpush1.msra.mxu0 0.0
    %632 = vmatprep.subr.mxu0 0.0
    %633 = vmatpush1.msra.mxu0 0.0
    %634 = vmatprep.subr.mxu0 0.0
    %635 = vmatpush1.msra.mxu0 0.0
    %636 = vmatprep.subr.mxu0 0.0
    %637 = vmatpush1.msra.mxu0 0.0
    %638 = vmatprep.subr.mxu0 0.0
    %v639 = vand.u32 %v247, 4294901760
    %v640 = vsub.f32 %v247, %v639
    %v641 = vand.u32 %v640, 4294901760
    %642 = vmatpush1.msra.mxu0 %v641
    %643 = vmatprep.subr.mxu0 0.0
    %v644 = vand.u32 %v246, 4294901760
    %v645 = vsub.f32 %v246, %v644
    %v646 = vand.u32 %v645, 4294901760
    %647 = vmatpush1.msra.mxu0 %v646
    %648 = vmatprep.subr.mxu0 0.0
    %v649 = vand.u32 %v245, 4294901760
    %v650 = vsub.f32 %v245, %v649
    %v651 = vand.u32 %v650, 4294901760
    %652 = vmatpush1.msra.mxu0 %v651
    %653 = vmatprep.subr.mxu0 0.0
    %v654 = vand.u32 %v244, 4294901760
    %v655 = vsub.f32 %v244, %v654
    %v656 = vand.u32 %v655, 4294901760
    %657 = vmatpush1.msra.mxu0 %v656
    %658 = vmatprep.subr.mxu0 0.0
    %v659 = vand.u32 %v243, 4294901760
    %v660 = vsub.f32 %v243, %v659
    %v661 = vand.u32 %v660, 4294901760
    %662 = vmatpush1.msra.mxu0 %v661
    %663 = vmatprep.subr.mxu0 0.0
    %v664 = vand.u32 %v242, 4294901760
    %v665 = vsub.f32 %v242, %v664
    %v666 = vand.u32 %v665, 4294901760
    %667 = vmatpush1.msra.mxu0 %v666
    %668 = vmatprep.subr.mxu0 0.0
    %v669 = vand.u32 %v241, 4294901760
    %v670 = vsub.f32 %v241, %v669
    %v671 = vand.u32 %v670, 4294901760
    %672 = vmatpush1.msra.mxu0 %v671
    %673 = vmatprep.subr.mxu0 0.0
    %v674 = vand.u32 %v240, 4294901760
    %v675 = vsub.f32 %v240, %v674
    %v676 = vand.u32 %v675, 4294901760
    %677 = vmatpush1.msra.mxu0 %v676
    %678 = vmatprep.subr.mxu0 0.0
    %679 = vmatpush2.msra.mxu0 0.0
    %680 = vmatprep.subr.mxu0 0.0
    %681 = vmatpush2.msra.mxu0 0.0
    %682 = vmatprep.subr.mxu0 0.0
    %683 = vmatpush2.msra.mxu0 0.0
    %684 = vmatprep.subr.mxu0 0.0
    %685 = vmatpush2.msra.mxu0 0.0
    %686 = vmatprep.subr.mxu0 0.0
    %687 = vmatpush2.msra.mxu0 0.0
    %688 = vmatprep.subr.mxu0 0.0
    %689 = vmatpush2.msra.mxu0 0.0
    %690 = vmatprep.subr.mxu0 0.0
    %691 = vmatpush2.msra.mxu0 0.0
    %692 = vmatprep.subr.mxu0 0.0
    %693 = vmatpush2.msra.mxu0 0.0
    %694 = vmatprep.subr.mxu0 0.0
    %695 = vmatpush2.msra.mxu0 0.0
    %696 = vmatprep.subr.mxu0 0.0
    %697 = vmatpush2.msra.mxu0 0.0
    %698 = vmatprep.subr.mxu0 0.0
    %699 = vmatpush2.msra.mxu0 0.0
    %700 = vmatprep.subr.mxu0 0.0
    %701 = vmatpush2.msra.mxu0 0.0
    %702 = vmatprep.subr.mxu0 0.0
    %703 = vmatpush2.msra.mxu0 0.0
    %704 = vmatprep.subr.mxu0 0.0
    %705 = vmatpush2.msra.mxu0 0.0
    %706 = vmatprep.subr.mxu0 0.0
    %707 = vmatpush2.msra.mxu0 0.0
    %708 = vmatprep.subr.mxu0 0.0
    %709 = vmatpush2.msra.mxu0 0.0
    %710 = vmatprep.mubr.f32.mxu0 0.0
    %v711 = vand.u32 %v257, 4294901760
    %712 = vmatmul.mubr.f32.gmra.mxu0 %v711
    %v713 = vpop.f32.mrf.mxu0
    %v714 = vadd.f32 %v619, %v713
    %v715 = vpop.f32.mrf.mxu0
    %716 = vdwg.mxu0
    %717 = vmatprep.subr.mxu0 0.0
    %718 = vmatpush1.msra.mxu0 0.0
    %719 = vmatprep.subr.mxu0 0.0
    %720 = vmatpush1.msra.mxu0 0.0
    %721 = vmatprep.subr.mxu0 0.0
    %722 = vmatpush1.msra.mxu0 0.0
    %723 = vmatprep.subr.mxu0 0.0
    %724 = vmatpush1.msra.mxu0 0.0
    %725 = vmatprep.subr.mxu0 0.0
    %726 = vmatpush1.msra.mxu0 0.0
    %727 = vmatprep.subr.mxu0 0.0
    %728 = vmatpush1.msra.mxu0 0.0
    %729 = vmatprep.subr.mxu0 0.0
    %730 = vmatpush1.msra.mxu0 0.0
    %731 = vmatprep.subr.mxu0 0.0
    %732 = vmatpush1.msra.mxu0 0.0
    %733 = vmatprep.subr.mxu0 0.0
    %v734 = vand.u32 %v247, 4294901760
    %735 = vmatpush1.msra.mxu0 %v734
    %736 = vmatprep.subr.mxu0 0.0
    %v737 = vand.u32 %v246, 4294901760
    %738 = vmatpush1.msra.mxu0 %v737
    %739 = vmatprep.subr.mxu0 0.0
    %v740 = vand.u32 %v245, 4294901760
    %741 = vmatpush1.msra.mxu0 %v740
    %742 = vmatprep.subr.mxu0 0.0
    %v743 = vand.u32 %v244, 4294901760
    %744 = vmatpush1.msra.mxu0 %v743
    %745 = vmatprep.subr.mxu0 0.0
    %v746 = vand.u32 %v243, 4294901760
    %747 = vmatpush1.msra.mxu0 %v746
    %748 = vmatprep.subr.mxu0 0.0
    %v749 = vand.u32 %v242, 4294901760
    %750 = vmatpush1.msra.mxu0 %v749
    %751 = vmatprep.subr.mxu0 0.0
    %v752 = vand.u32 %v241, 4294901760
    %753 = vmatpush1.msra.mxu0 %v752
    %754 = vmatprep.subr.mxu0 0.0
    %v755 = vand.u32 %v240, 4294901760
    %756 = vmatpush1.msra.mxu0 %v755
    %757 = vmatprep.subr.mxu0 0.0
    %758 = vmatpush2.msra.mxu0 0.0
    %759 = vmatprep.subr.mxu0 0.0
    %760 = vmatpush2.msra.mxu0 0.0
    %761 = vmatprep.subr.mxu0 0.0
    %762 = vmatpush2.msra.mxu0 0.0
    %763 = vmatprep.subr.mxu0 0.0
    %764 = vmatpush2.msra.mxu0 0.0
    %765 = vmatprep.subr.mxu0 0.0
    %766 = vmatpush2.msra.mxu0 0.0
    %767 = vmatprep.subr.mxu0 0.0
    %768 = vmatpush2.msra.mxu0 0.0
    %769 = vmatprep.subr.mxu0 0.0
    %770 = vmatpush2.msra.mxu0 0.0
    %771 = vmatprep.subr.mxu0 0.0
    %772 = vmatpush2.msra.mxu0 0.0
    %773 = vmatprep.subr.mxu0 0.0
    %774 = vmatpush2.msra.mxu0 0.0
    %775 = vmatprep.subr.mxu0 0.0
    %776 = vmatpush2.msra.mxu0 0.0
    %777 = vmatprep.subr.mxu0 0.0
    %778 = vmatpush2.msra.mxu0 0.0
    %779 = vmatprep.subr.mxu0 0.0
    %780 = vmatpush2.msra.mxu0 0.0
    %781 = vmatprep.subr.mxu0 0.0
    %782 = vmatpush2.msra.mxu0 0.0
    %783 = vmatprep.subr.mxu0 0.0
    %784 = vmatpush2.msra.mxu0 0.0
    %785 = vmatprep.subr.mxu0 0.0
    %786 = vmatpush2.msra.mxu0 0.0
    %787 = vmatprep.subr.mxu0 0.0
    %788 = vmatpush2.msra.mxu0 0.0
    %789 = vmatprep.mubr.f32.mxu0 0.0
    %v790 = vand.u32 %v257, 4294901760
    %791 = vmatmul.mubr.f32.gmra.mxu0 %v790
    %v792 = vpop.f32.mrf.mxu0
    %v793 = vadd.f32 %v714, %v792
    %v794 = vpop.f32.mrf.mxu0
    %795 = vdwg.mxu0
    %v796 = vmax.f32 %v793, -0.15625
    %v797 = vmin.f32 %v796, 0.15625
    %v798 = vld [vmem:[#allocation10] sm:$0xff]
    %v799 = vld [vmem:[#allocation11] sm:$0xff]
    %v800 = vld [vmem:[#allocation11 + $0x8] sm:$0x1]
    %v801 = vld [vmem:[#allocation13] sm:$0xff]
    %v802 = vld [vmem:[#allocation13 + $0x8] sm:$0x1]
    %v803 = vld [vmem:[#allocation14] sm:$0xff]
    %v804 = vld [vmem:[#allocation14 + $0x8] sm:$0x1]
    %v805 = vld [vmem:[#allocation16] sm:$0xff]
    %v806 = vld [vmem:[#allocation16 + $0x8] sm:$0x1]
    %v807 = vld [vmem:[%s9] sm:$0xff]
    %v808 = vld [vmem:[%s9 + $0x8] sm:$0x1]
    %v809 = vld [vmem:[#allocation17] sm:$0xff]
    %v810 = vld [vmem:[#allocation17 + $0x8] sm:$0x1]
    %v811 = vld [vmem:[#allocation19] sm:$0xff]
    %v812 = vld [vmem:[#allocation19 + $0x8] sm:$0x1]
    %v813 = vld [vmem:[#allocation20] sm:$0xff]
    %v814 = vld [vmem:[#allocation20 + $0x8] sm:$0x1]
    %v815 = vlaneseq
    %v816 = vshrl.u32 %v815, 7
    %v817 = vsub.s32 0, %v816
    %v818 = vrot.slane %v798, %v817
    %vm819 = vcmp.lt.f32.partialorder %v818, %v797
    %v820 = vlaneseq
    %v821 = vshrl.u32 %v820, 7
    %v822 = vsub.s32 1, %v821
    %v823 = vrot.slane %v799, %v822
    %v824 = vlaneseq
    %v825 = vshrl.u32 %v824, 7
    %v826 = vsub.s32 0, %v825
    %v827 = vrot.slane %v799, %v826
    %v828 = vsel %vm819, %v823, %v827
    %v829 = vlaneseq
    %v830 = vshrl.u32 %v829, 7
    %v831 = vsub.s32 1, %v830
    %v832 = vrot.slane %v801, %v831
    %v833 = vlaneseq
    %v834 = vshrl.u32 %v833, 7
    %v835 = vsub.s32 0, %v834
    %v836 = vrot.slane %v801, %v835
    %v837 = vsel %vm819, %v832, %v836
    %v838 = vlaneseq
    %v839 = vshrl.u32 %v838, 7
    %v840 = vsub.s32 1, %v839
    %v841 = vrot.slane %v803, %v840
    %v842 = vlaneseq
    %v843 = vshrl.u32 %v842, 7
    %v844 = vsub.s32 0, %v843
    %v845 = vrot.slane %v803, %v844
    %v846 = vsel %vm819, %v841, %v845
    %v847 = vlaneseq
    %v848 = vshrl.u32 %v847, 7
    %v849 = vsub.s32 1, %v848
    %v850 = vrot.slane %v805, %v849
    %v851 = vlaneseq
    %v852 = vshrl.u32 %v851, 7
    %v853 = vsub.s32 0, %v852
    %v854 = vrot.slane %v805, %v853
    %v855 = vsel %vm819, %v850, %v854
    %v856 = vlaneseq
    %v857 = vshrl.u32 %v856, 7
    %v858 = vsub.s32 1, %v857
    %v859 = vrot.slane %v807, %v858
    %v860 = vlaneseq
    %v861 = vshrl.u32 %v860, 7
    %v862 = vsub.s32 0, %v861
    %v863 = vrot.slane %v807, %v862
    %v864 = vsel %vm819, %v859, %v863
    %v865 = vlaneseq
    %v866 = vshrl.u32 %v865, 7
    %v867 = vsub.s32 1, %v866
    %v868 = vrot.slane %v809, %v867
    %v869 = vlaneseq
    %v870 = vshrl.u32 %v869, 7
    %v871 = vsub.s32 0, %v870
    %v872 = vrot.slane %v809, %v871
    %v873 = vsel %vm819, %v868, %v872
    %v874 = vlaneseq
    %v875 = vshrl.u32 %v874, 7
    %v876 = vsub.s32 1, %v875
    %v877 = vrot.slane %v811, %v876
    %v878 = vlaneseq
    %v879 = vshrl.u32 %v878, 7
    %v880 = vsub.s32 0, %v879
    %v881 = vrot.slane %v811, %v880
    %v882 = vsel %vm819, %v877, %v881
    %v883 = vlaneseq
    %v884 = vshrl.u32 %v883, 7
    %v885 = vsub.s32 1, %v884
    %v886 = vrot.slane %v813, %v885
    %v887 = vlaneseq
    %v888 = vshrl.u32 %v887, 7
    %v889 = vsub.s32 0, %v888
    %v890 = vrot.slane %v813, %v889
    %v891 = vsel %vm819, %v886, %v890
    %v892 = vlaneseq
    %v893 = vshrl.u32 %v892, 7
    %v894 = vsub.s32 1, %v893
    %v895 = vrot.slane %v798, %v894
    %vm896 = vcmp.lt.f32.partialorder %v895, %v797
    %v897 = vlaneseq
    %v898 = vshrl.u32 %v897, 7
    %v899 = vsub.s32 2, %v898
    %v900 = vrot.slane %v799, %v899
    %v901 = vsel %vm896, %v900, %v828
    %v902 = vlaneseq
    %v903 = vshrl.u32 %v902, 7
    %v904 = vsub.s32 2, %v903
    %v905 = vrot.slane %v801, %v904
    %v906 = vsel %vm896, %v905, %v837
    %v907 = vlaneseq
    %v908 = vshrl.u32 %v907, 7
    %v909 = vsub.s32 2, %v908
    %v910 = vrot.slane %v803, %v909
    %v911 = vsel %vm896, %v910, %v846
    %v912 = vlaneseq
    %v913 = vshrl.u32 %v912, 7
    %v914 = vsub.s32 2, %v913
    %v915 = vrot.slane %v805, %v914
    %v916 = vsel %vm896, %v915, %v855
    %v917 = vlaneseq
    %v918 = vshrl.u32 %v917, 7
    %v919 = vsub.s32 2, %v918
    %v920 = vrot.slane %v807, %v919
    %v921 = vsel %vm896, %v920, %v864
    %v922 = vlaneseq
    %v923 = vshrl.u32 %v922, 7
    %v924 = vsub.s32 2, %v923
    %v925 = vrot.slane %v809, %v924
    %v926 = vsel %vm896, %v925, %v873
    %v927 = vlaneseq
    %v928 = vshrl.u32 %v927, 7
    %v929 = vsub.s32 2, %v928
    %v930 = vrot.slane %v811, %v929
    %v931 = vsel %vm896, %v930, %v882
    %v932 = vlaneseq
    %v933 = vshrl.u32 %v932, 7
    %v934 = vsub.s32 2, %v933
    %v935 = vrot.slane %v813, %v934
    %v936 = vsel %vm896, %v935, %v891
    %v937 = vlaneseq
    %v938 = vshrl.u32 %v937, 7
    %v939 = vsub.s32 2, %v938
    %v940 = vrot.slane %v798, %v939
    %vm941 = vcmp.lt.f32.partialorder %v940, %v797
    %v942 = vlaneseq
    %v943 = vshrl.u32 %v942, 7
    %v944 = vsub.s32 3, %v943
    %v945 = vrot.slane %v799, %v944
    %v946 = vsel %vm941, %v945, %v901
    %v947 = vlaneseq
    %v948 = vshrl.u32 %v947, 7
    %v949 = vsub.s32 3, %v948
    %v950 = vrot.slane %v801, %v949
    %v951 = vsel %vm941, %v950, %v906
    %v952 = vlaneseq
    %v953 = vshrl.u32 %v952, 7
    %v954 = vsub.s32 3, %v953
    %v955 = vrot.slane %v803, %v954
    %v956 = vsel %vm941, %v955, %v911
    %v957 = vlaneseq
    %v958 = vshrl.u32 %v957, 7
    %v959 = vsub.s32 3, %v958
    %v960 = vrot.slane %v805, %v959
    %v961 = vsel %vm941, %v960, %v916
    %v962 = vlaneseq
    %v963 = vshrl.u32 %v962, 7
    %v964 = vsub.s32 3, %v963
    %v965 = vrot.slane %v807, %v964
    %v966 = vsel %vm941, %v965, %v921
    %v967 = vlaneseq
    %v968 = vshrl.u32 %v967, 7
    %v969 = vsub.s32 3, %v968
    %v970 = vrot.slane %v809, %v969
    %v971 = vsel %vm941, %v970, %v926
    %v972 = vlaneseq
    %v973 = vshrl.u32 %v972, 7
    %v974 = vsub.s32 3, %v973
    %v975 = vrot.slane %v811, %v974
    %v976 = vsel %vm941, %v975, %v931
    %v977 = vlaneseq
    %v978 = vshrl.u32 %v977, 7
    %v979 = vsub.s32 3, %v978
    %v980 = vrot.slane %v813, %v979
    %v981 = vsel %vm941, %v980, %v936
    %v982 = vlaneseq
    %v983 = vshrl.u32 %v982, 7
    %v984 = vsub.s32 3, %v983
    %v985 = vrot.slane %v798, %v984
    %vm986 = vcmp.lt.f32.partialorder %v985, %v797
    %v987 = vlaneseq
    %v988 = vshrl.u32 %v987, 7
    %v989 = vsub.s32 4, %v988
    %v990 = vrot.slane %v799, %v989
    %v991 = vsel %vm986, %v990, %v946
    %v992 = vlaneseq
    %v993 = vshrl.u32 %v992, 7
    %v994 = vsub.s32 4, %v993
    %v995 = vrot.slane %v801, %v994
    %v996 = vsel %vm986, %v995, %v951
    %v997 = vlaneseq
    %v998 = vshrl.u32 %v997, 7
    %v999 = vsub.s32 4, %v998
    %v1000 = vrot.slane %v803, %v999
    %v1001 = vsel %vm986, %v1000, %v956
    %v1002 = vlaneseq
    %v1003 = vshrl.u32 %v1002, 7
    %v1004 = vsub.s32 4, %v1003
    %v1005 = vrot.slane %v805, %v1004
    %v1006 = vsel %vm986, %v1005, %v961
    %v1007 = vlaneseq
    %v1008 = vshrl.u32 %v1007, 7
    %v1009 = vsub.s32 4, %v1008
    %v1010 = vrot.slane %v807, %v1009
    %v1011 = vsel %vm986, %v1010, %v966
    %v1012 = vlaneseq
    %v1013 = vshrl.u32 %v1012, 7
    %v1014 = vsub.s32 4, %v1013
    %v1015 = vrot.slane %v809, %v1014
    %v1016 = vsel %vm986, %v1015, %v971
    %v1017 = vlaneseq
    %v1018 = vshrl.u32 %v1017, 7
    %v1019 = vsub.s32 4, %v1018
    %v1020 = vrot.slane %v811, %v1019
    %v1021 = vsel %vm986, %v1020, %v976
    %v1022 = vlaneseq
    %v1023 = vshrl.u32 %v1022, 7
    %v1024 = vsub.s32 4, %v1023
    %v1025 = vrot.slane %v813, %v1024
    %v1026 = vsel %vm986, %v1025, %v981
    %v1027 = vlaneseq
    %v1028 = vshrl.u32 %v1027, 7
    %v1029 = vsub.s32 4, %v1028
    %v1030 = vrot.slane %v798, %v1029
    %vm1031 = vcmp.lt.f32.partialorder %v1030, %v797
    %v1032 = vlaneseq
    %v1033 = vshrl.u32 %v1032, 7
    %v1034 = vsub.s32 5, %v1033
    %v1035 = vrot.slane %v799, %v1034
    %v1036 = vsel %vm1031, %v1035, %v991
    %v1037 = vlaneseq
    %v1038 = vshrl.u32 %v1037, 7
    %v1039 = vsub.s32 5, %v1038
    %v1040 = vrot.slane %v801, %v1039
    %v1041 = vsel %vm1031, %v1040, %v996
    %v1042 = vlaneseq
    %v1043 = vshrl.u32 %v1042, 7
    %v1044 = vsub.s32 5, %v1043
    %v1045 = vrot.slane %v803, %v1044
    %v1046 = vsel %vm1031, %v1045, %v1001
    %v1047 = vlaneseq
    %v1048 = vshrl.u32 %v1047, 7
    %v1049 = vsub.s32 5, %v1048
    %v1050 = vrot.slane %v805, %v1049
    %v1051 = vsel %vm1031, %v1050, %v1006
    %v1052 = vlaneseq
    %v1053 = vshrl.u32 %v1052, 7
    %v1054 = vsub.s32 5, %v1053
    %v1055 = vrot.slane %v807, %v1054
    %v1056 = vsel %vm1031, %v1055, %v1011
    %v1057 = vlaneseq
    %v1058 = vshrl.u32 %v1057, 7
    %v1059 = vsub.s32 5, %v1058
    %v1060 = vrot.slane %v809, %v1059
    %v1061 = vsel %vm1031, %v1060, %v1016
    %v1062 = vlaneseq
    %v1063 = vshrl.u32 %v1062, 7
    %v1064 = vsub.s32 5, %v1063
    %v1065 = vrot.slane %v811, %v1064
    %v1066 = vsel %vm1031, %v1065, %v1021
    %v1067 = vlaneseq
    %v1068 = vshrl.u32 %v1067, 7
    %v1069 = vsub.s32 5, %v1068
    %v1070 = vrot.slane %v813, %v1069
    %v1071 = vsel %vm1031, %v1070, %v1026
    %v1072 = vlaneseq
    %v1073 = vshrl.u32 %v1072, 7
    %v1074 = vsub.s32 5, %v1073
    %v1075 = vrot.slane %v798, %v1074
    %vm1076 = vcmp.lt.f32.partialorder %v1075, %v797
    %v1077 = vlaneseq
    %v1078 = vshrl.u32 %v1077, 7
    %v1079 = vsub.s32 6, %v1078
    %v1080 = vrot.slane %v799, %v1079
    %v1081 = vsel %vm1076, %v1080, %v1036
    %v1082 = vlaneseq
    %v1083 = vshrl.u32 %v1082, 7
    %v1084 = vsub.s32 6, %v1083
    %v1085 = vrot.slane %v801, %v1084
    %v1086 = vsel %vm1076, %v1085, %v1041
    %v1087 = vlaneseq
    %v1088 = vshrl.u32 %v1087, 7
    %v1089 = vsub.s32 6, %v1088
    %v1090 = vrot.slane %v803, %v1089
    %v1091 = vsel %vm1076, %v1090, %v1046
    %v1092 = vlaneseq
    %v1093 = vshrl.u32 %v1092, 7
    %v1094 = vsub.s32 6, %v1093
    %v1095 = vrot.slane %v805, %v1094
    %v1096 = vsel %vm1076, %v1095, %v1051
    %v1097 = vlaneseq
    %v1098 = vshrl.u32 %v1097, 7
    %v1099 = vsub.s32 6, %v1098
    %v1100 = vrot.slane %v807, %v1099
    %v1101 = vsel %vm1076, %v1100, %v1056
    %v1102 = vlaneseq
    %v1103 = vshrl.u32 %v1102, 7
    %v1104 = vsub.s32 6, %v1103
    %v1105 = vrot.slane %v809, %v1104
    %v1106 = vsel %vm1076, %v1105, %v1061
    %v1107 = vlaneseq
    %v1108 = vshrl.u32 %v1107, 7
    %v1109 = vsub.s32 6, %v1108
    %v1110 = vrot.slane %v811, %v1109
    %v1111 = vsel %vm1076, %v1110, %v1066
    %v1112 = vlaneseq
    %v1113 = vshrl.u32 %v1112, 7
    %v1114 = vsub.s32 6, %v1113
    %v1115 = vrot.slane %v813, %v1114
    %v1116 = vsel %vm1076, %v1115, %v1071
    %v1117 = vlaneseq
    %v1118 = vshrl.u32 %v1117, 7
    %v1119 = vsub.s32 6, %v1118
    %v1120 = vrot.slane %v798, %v1119
    %vm1121 = vcmp.lt.f32.partialorder %v1120, %v797
    %v1122 = vlaneseq
    %v1123 = vshrl.u32 %v1122, 7
    %v1124 = vsub.s32 7, %v1123
    %v1125 = vrot.slane %v799, %v1124
    %v1126 = vsel %vm1121, %v1125, %v1081
    %v1127 = vlaneseq
    %v1128 = vshrl.u32 %v1127, 7
    %v1129 = vsub.s32 7, %v1128
    %v1130 = vrot.slane %v801, %v1129
    %v1131 = vsel %vm1121, %v1130, %v1086
    %v1132 = vlaneseq
    %v1133 = vshrl.u32 %v1132, 7
    %v1134 = vsub.s32 7, %v1133
    %v1135 = vrot.slane %v803, %v1134
    %v1136 = vsel %vm1121, %v1135, %v1091
    %v1137 = vlaneseq
    %v1138 = vshrl.u32 %v1137, 7
    %v1139 = vsub.s32 7, %v1138
    %v1140 = vrot.slane %v805, %v1139
    %v1141 = vsel %vm1121, %v1140, %v1096
    %v1142 = vlaneseq
    %v1143 = vshrl.u32 %v1142, 7
    %v1144 = vsub.s32 7, %v1143
    %v1145 = vrot.slane %v807, %v1144
    %v1146 = vsel %vm1121, %v1145, %v1101
    %v1147 = vlaneseq
    %v1148 = vshrl.u32 %v1147, 7
    %v1149 = vsub.s32 7, %v1148
    %v1150 = vrot.slane %v809, %v1149
    %v1151 = vsel %vm1121, %v1150, %v1106
    %v1152 = vlaneseq
    %v1153 = vshrl.u32 %v1152, 7
    %v1154 = vsub.s32 7, %v1153
    %v1155 = vrot.slane %v811, %v1154
    %v1156 = vsel %vm1121, %v1155, %v1111
    %v1157 = vlaneseq
    %v1158 = vshrl.u32 %v1157, 7
    %v1159 = vsub.s32 7, %v1158
    %v1160 = vrot.slane %v813, %v1159
    %v1161 = vsel %vm1121, %v1160, %v1116
    %v1162 = vlaneseq
    %v1163 = vshrl.u32 %v1162, 7
    %v1164 = vsub.s32 7, %v1163
    %v1165 = vrot.slane %v798, %v1164
    %vm1166 = vcmp.lt.f32.partialorder %v1165, %v797
    %v1167 = vlaneseq
    %v1168 = vshrl.u32 %v1167, 7
    %v1169 = vsub.s32 0, %v1168
    %v1170 = vrot.slane %v800, %v1169
    %v1171 = vsel %vm1166, %v1170, %v1126
    %v1172 = vlaneseq
    %v1173 = vshrl.u32 %v1172, 7
    %v1174 = vsub.s32 0, %v1173
    %v1175 = vrot.slane %v802, %v1174
    %v1176 = vsel %vm1166, %v1175, %v1131
    %v1177 = vlaneseq
    %v1178 = vshrl.u32 %v1177, 7
    %v1179 = vsub.s32 0, %v1178
    %v1180 = vrot.slane %v804, %v1179
    %v1181 = vsel %vm1166, %v1180, %v1136
    %v1182 = vlaneseq
    %v1183 = vshrl.u32 %v1182, 7
    %v1184 = vsub.s32 0, %v1183
    %v1185 = vrot.slane %v806, %v1184
    %v1186 = vsel %vm1166, %v1185, %v1141
    %v1187 = vlaneseq
    %v1188 = vshrl.u32 %v1187, 7
    %v1189 = vsub.s32 0, %v1188
    %v1190 = vrot.slane %v808, %v1189
    %v1191 = vsel %vm1166, %v1190, %v1146
    %v1192 = vlaneseq
    %v1193 = vshrl.u32 %v1192, 7
    %v1194 = vsub.s32 0, %v1193
    %v1195 = vrot.slane %v810, %v1194
    %v1196 = vsel %vm1166, %v1195, %v1151
    %v1197 = vlaneseq
    %v1198 = vshrl.u32 %v1197, 7
    %v1199 = vsub.s32 0, %v1198
    %v1200 = vrot.slane %v812, %v1199
    %v1201 = vsel %vm1166, %v1200, %v1156
    %v1202 = vlaneseq
    %v1203 = vshrl.u32 %v1202, 7
    %v1204 = vsub.s32 0, %v1203
    %v1205 = vrot.slane %v814, %v1204
    %v1206 = vsel %vm1166, %v1205, %v1161
    %v1207 = vld [vmem:[%s13] sm:$0x1]
    %v1209 = vlaneseq
    %v1210 = vshrl.u32 %v1209, 7
    %v1211 = vsub.s32 0, %v1210
    %v1212 = vrot.slane %v1207, %v1211
    %v1214 = vmul.f32 %v1212, %v797
    %v1215 = vsub.f32 %v1171, %v1214
    %v1216 = vmul.f32 %v1215, 1.442695
    %v1217 = vpow.pop %v1216
    %v1218 = vsub.f32 %v1214, %v1176
    %v1219 = vmul.f32 %v1218, 1.442695
    %v1220 = vpow.pop %v1219
    %v1221 = vmul.f32 %v1217, %v1217
    %v1222 = vsub.f32 1.0, %v1221
    %v1223 = vmul.f32 %v1220, %v1220
    %v1224 = vsub.f32 1.0, %v1223
    %v1225 = vmul.f32 %v1224, %v1217
    %v1226 = vmul.f32 %v1222, %v1220
    %v1227 = vmul.f32 %v1226, %v1186
    %v1228 = vmul.f32 %v1181, %v1217
    %v1229 = vadd.f32 %v1227, %v1228
    %v1230 = vmul.f32 %v1225, %v1225
    %v1231 = vmul.f32 %v1230, %v1191
    %v1232 = vmul.f32 %v1226, %v1226
    %v1233 = vmul.f32 %v1232, %v1196
    %v1234 = vadd.f32 %v1231, %v1233
    %v1235 = vmul.f32 %v1225, %v1226
    %v1236 = vmul.f32 %v1235, %v1201
    %v1237 = vadd.f32 %v1234, %v1236
    %v1238 = vmul.f32 %v1206, %v1224
    %v1239 = vmul.f32 %v1238, %v1222
    %v1240 = vadd.f32 %v1237, %v1239
    %v1241 = vld [vmem:[#allocation22] sm:$0xff]
    %v1242 = vld [vmem:[#allocation22 + $0x8] sm:$0xff]
    %v1243 = vld [vmem:[#allocation22 + $0x10] sm:$0xff]
    %v1244 = vld [vmem:[#allocation22 + $0x18] sm:$0xff]
    %v1245 = vld [vmem:[#allocation22 + $0x20] sm:$0xff]
    %v1246 = vld [vmem:[#allocation22 + $0x28] sm:$0xff]
    %v1247 = vld [vmem:[#allocation22 + $0x30] sm:$0xff]
    %v1248 = vld [vmem:[#allocation22 + $0x38] sm:$0xff]
    %v1249 = vld [vmem:[#allocation22 + $0x40] sm:$0xff]
    %v1250 = vld [vmem:[#allocation22 + $0x48] sm:$0xff]
    %v1251 = vld [vmem:[#allocation22 + $0x50] sm:$0xff]
    %v1252 = vld [vmem:[#allocation22 + $0x58] sm:$0xff]
    %v1253 = vld [vmem:[#allocation22 + $0x60] sm:$0xff]
    %v1254 = vld [vmem:[#allocation22 + $0x68] sm:$0xff]
    %v1255 = vld [vmem:[#allocation22 + $0x70] sm:$0xff]
    %v1256 = vld [vmem:[#allocation22 + $0x78] sm:$0xff]
    %v1257 = vld [vmem:[%s16] sm:$0x1]
    %v1259 = vlaneseq
    %v1260 = vshrl.u32 %v1259, 7
    %v1261 = vsub.s32 0, %v1260
    %v1262 = vrot.slane %v1257, %v1261
    %1264 = vmatprep.subr.mxu0 0.0
    %1265 = vmatpush1.msra.mxu0 %v1256
    %1266 = vmatprep.subr.mxu0 0.0
    %1267 = vmatpush1.msra.mxu0 %v1255
    %1268 = vmatprep.subr.mxu0 0.0
    %1269 = vmatpush1.msra.mxu0 %v1254
    %1270 = vmatprep.subr.mxu0 0.0
    %1271 = vmatpush1.msra.mxu0 %v1253
    %1272 = vmatprep.subr.mxu0 0.0
    %1273 = vmatpush1.msra.mxu0 %v1252
    %1274 = vmatprep.subr.mxu0 0.0
    %1275 = vmatpush1.msra.mxu0 %v1251
    %1276 = vmatprep.subr.mxu0 0.0
    %1277 = vmatpush1.msra.mxu0 %v1250
    %1278 = vmatprep.subr.mxu0 0.0
    %1279 = vmatpush1.msra.mxu0 %v1249
    %1280 = vmatprep.subr.mxu0 0.0
    %1281 = vmatpush1.msra.mxu0 %v1248
    %1282 = vmatprep.subr.mxu0 0.0
    %1283 = vmatpush1.msra.mxu0 %v1247
    %1284 = vmatprep.subr.mxu0 0.0
    %1285 = vmatpush1.msra.mxu0 %v1246
    %1286 = vmatprep.subr.mxu0 0.0
    %1287 = vmatpush1.msra.mxu0 %v1245
    %1288 = vmatprep.subr.mxu0 0.0
    %1289 = vmatpush1.msra.mxu0 %v1244
    %1290 = vmatprep.subr.mxu0 0.0
    %1291 = vmatpush1.msra.mxu0 %v1243
    %1292 = vmatprep.subr.mxu0 0.0
    %1293 = vmatpush1.msra.mxu0 %v1242
    %1294 = vmatprep.subr.mxu0 0.0
    %1295 = vmatpush1.msra.mxu0 %v1241
    %1296 = vmatprep.subr.mxu0 0.0
    %1297 = vmatpush2.msra.mxu0 0.0
    %1298 = vmatprep.subr.mxu0 0.0
    %1299 = vmatpush2.msra.mxu0 0.0
    %1300 = vmatprep.subr.mxu0 0.0
    %1301 = vmatpush2.msra.mxu0 0.0
    %1302 = vmatprep.subr.mxu0 0.0
    %1303 = vmatpush2.msra.mxu0 0.0
    %1304 = vmatprep.subr.mxu0 0.0
    %1305 = vmatpush2.msra.mxu0 0.0
    %1306 = vmatprep.subr.mxu0 0.0
    %1307 = vmatpush2.msra.mxu0 0.0
    %1308 = vmatprep.subr.mxu0 0.0
    %1309 = vmatpush2.msra.mxu0 0.0
    %1310 = vmatprep.subr.mxu0 0.0
    %1311 = vmatpush2.msra.mxu0 0.0
    %1312 = vmatprep.subr.mxu0 0.0
    %1313 = vmatpush2.msra.mxu0 0.0
    %1314 = vmatprep.subr.mxu0 0.0
    %1315 = vmatpush2.msra.mxu0 0.0
    %1316 = vmatprep.subr.mxu0 0.0
    %1317 = vmatpush2.msra.mxu0 0.0
    %1318 = vmatprep.subr.mxu0 0.0
    %1319 = vmatpush2.msra.mxu0 0.0
    %1320 = vmatprep.subr.mxu0 0.0
    %1321 = vmatpush2.msra.mxu0 0.0
    %1322 = vmatprep.subr.mxu0 0.0
    %1323 = vmatpush2.msra.mxu0 0.0
    %1324 = vmatprep.subr.mxu0 0.0
    %1325 = vmatpush2.msra.mxu0 0.0
    %1326 = vmatprep.subr.mxu0 0.0
    %1327 = vmatpush2.msra.mxu0 0.0
    %1328 = vmatprep.mubr.f32.mxu0 0.0
    %1329 = vmatmul.mubr.f32.gmra.mxu0 %v1229
    %v1330 = vpop.f32.mrf.mxu0
    %v1331 = vadd.f32 %v1262, %v1330
    %v1332 = vpop.f32.mrf.mxu0
    %1333 = vdwg.mxu0
    %v1334 = vld [vmem:[#allocation23] sm:$0xff]
    %v1335 = vld [vmem:[#allocation23 + $0x8] sm:$0xff]
    %v1336 = vld [vmem:[#allocation23 + $0x10] sm:$0xff]
    %v1337 = vld [vmem:[#allocation23 + $0x18] sm:$0xff]
    %v1338 = vld [vmem:[#allocation23 + $0x20] sm:$0xff]
    %v1339 = vld [vmem:[#allocation23 + $0x28] sm:$0xff]
    %v1340 = vld [vmem:[#allocation23 + $0x30] sm:$0xff]
    %v1341 = vld [vmem:[#allocation23 + $0x38] sm:$0xff]
    %v1342 = vld [vmem:[#allocation23 + $0x40] sm:$0xff]
    %v1343 = vld [vmem:[#allocation23 + $0x48] sm:$0xff]
    %v1344 = vld [vmem:[#allocation23 + $0x50] sm:$0xff]
    %v1345 = vld [vmem:[#allocation23 + $0x58] sm:$0xff]
    %v1346 = vld [vmem:[#allocation23 + $0x60] sm:$0xff]
    %v1347 = vld [vmem:[#allocation23 + $0x68] sm:$0xff]
    %v1348 = vld [vmem:[#allocation23 + $0x70] sm:$0xff]
    %v1349 = vld [vmem:[#allocation23 + $0x78] sm:$0xff]
    %1350 = vmatprep.subr.mxu0 0.0
    %1351 = vmatpush1.msra.mxu0 %v1349
    %1352 = vmatprep.subr.mxu0 0.0
    %1353 = vmatpush1.msra.mxu0 %v1348
    %1354 = vmatprep.subr.mxu0 0.0
    %1355 = vmatpush1.msra.mxu0 %v1347
    %1356 = vmatprep.subr.mxu0 0.0
    %1357 = vmatpush1.msra.mxu0 %v1346
    %1358 = vmatprep.subr.mxu0 0.0
    %1359 = vmatpush1.msra.mxu0 %v1345
    %1360 = vmatprep.subr.mxu0 0.0
    %1361 = vmatpush1.msra.mxu0 %v1344
    %1362 = vmatprep.subr.mxu0 0.0
    %1363 = vmatpush1.msra.mxu0 %v1343
    %1364 = vmatprep.subr.mxu0 0.0
    %1365 = vmatpush1.msra.mxu0 %v1342
    %1366 = vmatprep.subr.mxu0 0.0
    %1367 = vmatpush1.msra.mxu0 %v1341
    %1368 = vmatprep.subr.mxu0 0.0
    %1369 = vmatpush1.msra.mxu0 %v1340
    %1370 = vmatprep.subr.mxu0 0.0
    %1371 = vmatpush1.msra.mxu0 %v1339
    %1372 = vmatprep.subr.mxu0 0.0
    %1373 = vmatpush1.msra.mxu0 %v1338
    %1374 = vmatprep.subr.mxu0 0.0
    %1375 = vmatpush1.msra.mxu0 %v1337
    %1376 = vmatprep.subr.mxu0 0.0
    %1377 = vmatpush1.msra.mxu0 %v1336
    %1378 = vmatprep.subr.mxu0 0.0
    %1379 = vmatpush1.msra.mxu0 %v1335
    %1380 = vmatprep.subr.mxu0 0.0
    %1381 = vmatpush1.msra.mxu0 %v1334
    %1382 = vmatprep.subr.mxu0 0.0
    %1383 = vmatpush2.msra.mxu0 0.0
    %1384 = vmatprep.subr.mxu0 0.0
    %1385 = vmatpush2.msra.mxu0 0.0
    %1386 = vmatprep.subr.mxu0 0.0
    %1387 = vmatpush2.msra.mxu0 0.0
    %1388 = vmatprep.subr.mxu0 0.0
    %1389 = vmatpush2.msra.mxu0 0.0
    %1390 = vmatprep.subr.mxu0 0.0
    %1391 = vmatpush2.msra.mxu0 0.0
    %1392 = vmatprep.subr.mxu0 0.0
    %1393 = vmatpush2.msra.mxu0 0.0
    %1394 = vmatprep.subr.mxu0 0.0
    %1395 = vmatpush2.msra.mxu0 0.0
    %1396 = vmatprep.subr.mxu0 0.0
    %1397 = vmatpush2.msra.mxu0 0.0
    %1398 = vmatprep.subr.mxu0 0.0
    %1399 = vmatpush2.msra.mxu0 0.0
    %1400 = vmatprep.subr.mxu0 0.0
    %1401 = vmatpush2.msra.mxu0 0.0
    %1402 = vmatprep.subr.mxu0 0.0
    %1403 = vmatpush2.msra.mxu0 0.0
    %1404 = vmatprep.subr.mxu0 0.0
    %1405 = vmatpush2.msra.mxu0 0.0
    %1406 = vmatprep.subr.mxu0 0.0
    %1407 = vmatpush2.msra.mxu0 0.0
    %1408 = vmatprep.subr.mxu0 0.0
    %1409 = vmatpush2.msra.mxu0 0.0
    %1410 = vmatprep.subr.mxu0 0.0
    %1411 = vmatpush2.msra.mxu0 0.0
    %1412 = vmatprep.subr.mxu0 0.0
    %1413 = vmatpush2.msra.mxu0 0.0
    %1414 = vmatprep.mubr.f32.mxu0 0.0
    %1415 = vmatmul.mubr.f32.gmra.mxu0 %v1240
    %v1416 = vpop.f32.mrf.mxu0
    %v1417 = vadd.f32 0.0, %v1416
    %v1418 = vpop.f32.mrf.mxu0
    %1419 = vdwg.mxu0
    %v1420 = vmax.f32 %v1417, 1e-05
    %v1421 = vrsqrt.pop %v1420
    %v1422 = vmul.f32 %v1420, %v1421
    %vm1423 = vcmp.eq.f32.partialorder %v1420, inf
    %v1424 = vsel %vm1423, %v1420, %v1422
    %vm1425 = vcmp.eq.f32.partialorder %v1420, 0.0
    %v1426 = vand.u32 %v1420, 2147483648
    %v1427 = vsel %vm1425, %v1426, %v1424
    %v1428 = vld [vmem:[#allocation5] sm:$0xf]
    %v1429 = vmul.f32 %v1427, %v1428
    %v1430 = vadd.f32 %v1331, %v1429
    %1431 = vst [vmem:[#allocation25] sm:$0xf] %v1430
    // Predicated region
    $region126: #{tpu_custom_call.1} parent=1 // pred_check
      _
    $region127: #{tpu_custom_call.1} parent=1 // pred_check_branch
      %1433 = sbr.rel (0) target = $region129
    $region128: #{tpu_custom_call.1} parent=1 // pred_region
      %s1435 = ssub.s32 64, 64
      %1436 = vsyncadd [#allocation4], %s1435
      %s1438 = sshll.u32 [#allocation25], 4
      %s1439 = int_to_ptr.vmem [resolvable:$true] %s1438
      %1441 = dma.vmem_to_hbm [thread:$0]  %s1439, 64, %s17, [#allocation4]
    $region129: #{tpu_custom_call.1} parent=1 // pred_fallthru
      _
    // Predicated region
    $region130: #{tpu_custom_call.1} parent=1 // pred_check
      _
    $region131: #{tpu_custom_call.1} parent=1 // pred_check_branch
      %1443 = sbr.rel (0) target = $region133
    $region132: #{tpu_custom_call.1} parent=1 // pred_region
      %1444 = dma.done [#allocation4], 64
    $region133: #{tpu_custom_call.1} parent=1 // pred_fallthru
      _
    %1445 = vsyncpa [#allocation3], 1
    %1446 = vsyncpa [#allocation6], 1
    %1447 = vsyncpa [#allocation9], 1
    %1448 = vsyncpa [#allocation12], 1
    %1449 = vsyncpa [#allocation15], 1
    %1450 = vsyncpa [#allocation18], 1
    %1451 = vsyncpa [#allocation21], 1
    %1452 = vsyncpa [#allocation24], 1
    %1453 = vsyncpa [#allocation4], 1

</llo_original>
